<compile_context>
chip_gen: v5e
topology: v5e:2x2
jax: 0.10.0
libtpu: 0.0.40
codegen_flags: <defaults>
</compile_context>

<pallas_src>
import functools

import jax
import jax.numpy as jnp
import numpy as np
from jax.experimental import pallas as pl
from jax.experimental.pallas import tpu as pltpu  # noqa: F401  (kept for future grid/VMEM tuning)


# ----------------------------------------------------------------------------
# Packed-weight slab layout (row offsets, 8-sublane aligned blocks).
# ----------------------------------------------------------------------------
def _slab_layout(vocab_size, hidden_size):
    wz_rows = vocab_size + hidden_size            # rows [0, V+H): [emb_proj ; w_hh]
    misc_off = ((wz_rows + 7) // 8) * 8           # rows: sos_proj / b_out / b_in
    wout_off = misc_off + 8                       # rows: lane-padded w_out.T
    total = ((wout_off + hidden_size + 7) // 8) * 8
    return wz_rows, misc_off, wout_off, total


# ----------------------------------------------------------------------------
# Pallas kernel: init hidden from input_linear, then fully-unrolled greedy
# LSTM decode loop with a single fused gate matmul per step.
# ----------------------------------------------------------------------------
def _sender_kernel(max_len, V, H,
                   x_ref,       # (B, Din)          flattened input embedding
                   w_in_ref,    # (Din, H)          input_linear weight.T
                   slab_ref,    # (rows, 4H)        packed decode weights
                   seq_ref,     # out: (B, max_len) int32
                   logits_ref): # out: (B, max_len*V) f32 (lane-dense)
    B = x_ref.shape[0]
    wz_rows, misc_off, wout_off, _ = _slab_layout(V, H)

    # Resident weights; static ref slices, loaded once before the loop.
    w_z = slab_ref[0:wz_rows, :]                       # (V+H, 4H) [emb_proj ; w_hh]
    w_hh = slab_ref[V:wz_rows, :]                      # (H, 4H)   step-0 h-path
    sos_proj = slab_ref[misc_off:misc_off + 1, :]      # (1, 4H)   sos@w_ih.T + gate bias
    b_out = slab_ref[misc_off + 1:misc_off + 2, 0:V]   # (1, V)
    b_in = slab_ref[misc_off + 2:misc_off + 3, 0:H]    # (1, H)
    w_out = slab_ref[wout_off:wout_off + H, 0:V]       # (H, V)
    wdt = w_z.dtype

    # h0 = input_linear(flattened input embedding); c0 = 0.
    h = jnp.dot(x_ref[...], w_in_ref[...],
                preferred_element_type=jnp.float32) + b_in
    c = jnp.zeros_like(h)

    # Hoisted out of the loop (JAX does not CSE broadcast_in_dim).
    vocab_iota = jax.lax.broadcasted_iota(jnp.int32, (B, V), 1)

    one_hot = None
    sym_steps = []
    logit_steps = []
    for t in range(max_len):                 # static full unroll (max_len = 8)
        if t == 0:
            # x-path of step 0 is the precomputed sos row (gate bias folded).
            z = sos_proj + jnp.dot(h.astype(wdt), w_hh,
                                   preferred_element_type=jnp.float32)
        else:
            # Fused gate matmul: [one_hot | h] @ [emb_proj ; w_hh].
            # one_hot @ emb_proj == output_embedding[sym] @ w_ih.T + gate bias.
            cat = jnp.concatenate([one_hot, h.astype(wdt)], axis=-1)
            z = jnp.dot(cat, w_z, preferred_element_type=jnp.float32)

        # PyTorch LSTM gate order i, f, g, o.  Two full-vreg EUP pushes; gate
        # lanes selected with static slices.
        sig = jax.nn.sigmoid(z)
        th = jnp.tanh(z)
        i_g = sig[:, 0 * H:1 * H]
        f_g = sig[:, 1 * H:2 * H]
        g_g = th[:, 2 * H:3 * H]
        o_g = sig[:, 3 * H:4 * H]
        c = f_g * c + i_g * g_g
        h = o_g * jnp.tanh(c)

        logits = jnp.dot(h.astype(wdt), w_out,
                         preferred_element_type=jnp.float32) + b_out

        # Greedy symbol (eval mode): first index attaining the row maximum
        # (matches torch.argmax / jnp.argmax tie-breaking).
        # TODO(synk): a NaN row yields sym == V and an all-zero one_hot,
        #             unlike torch.argmax; not expected for finite inputs.
        row_max = jnp.max(logits, axis=-1, keepdims=True)
        sym = jnp.min(jnp.where(logits == row_max, vocab_iota, V),
                      axis=-1, keepdims=True).astype(jnp.int32)      # (B, 1)

        sym_steps.append(sym)
        logit_steps.append(logits)

        if t + 1 < max_len:
            one_hot = (vocab_iota == sym).astype(wdt)

    # Batched, lane-dense output stores (one per output instead of max_len).
    logits_ref[...] = jnp.concatenate(logit_steps, axis=-1)
    seq_ref[...] = jnp.concatenate(sym_steps, axis=-1)


# ----------------------------------------------------------------------------
# One-time parameter packing (call once, NOT per forward): fusions/transposes.
# ----------------------------------------------------------------------------
def pack_params(params, *, weight_dtype=jnp.float32):
    f32 = jnp.float32
    H = params["w_hh"].shape[1]
    V = params["w_out"].shape[0]
    G = 4 * H
    assert V <= G and H <= G, "slab layout assumes V, H <= 4*H lanes"

    w_ih_t = params["w_ih"].astype(f32).T                                 # (Eout, 4H)
    b_gates = (params["b_ih"] + params["b_hh"]).astype(f32)[None, :]      # (1, 4H)
    emb_proj = params["output_embedding"].astype(f32) @ w_ih_t + b_gates  # (V, 4H)
    sos_proj = params["sos"].astype(f32)[None, :] @ w_ih_t + b_gates      # (1, 4H)
    w_hh_t = params["w_hh"].astype(f32).T                                 # (H, 4H)

    wz_rows, misc_off, wout_off, total = _slab_layout(V, H)
    slab = jnp.zeros((total, G), f32)
    slab = slab.at[0:V, :].set(emb_proj)
    slab = slab.at[V:wz_rows, :].set(w_hh_t)
    slab = slab.at[misc_off, :].set(sos_proj[0])
    slab = slab.at[misc_off + 1, 0:V].set(params["b_out"].astype(f32))
    slab = slab.at[misc_off + 2, 0:H].set(params["b_in"].astype(f32))
    slab = slab.at[wout_off:wout_off + H, 0:V].set(params["w_out"].astype(f32).T)

    return {
        "input_embedding": params["input_embedding"].astype(f32),
        "w_in_t": params["w_in"].astype(f32).T.astype(weight_dtype),      # (Din, H)
        "slab": slab.astype(weight_dtype),                                # (rows, 4H)
    }


# ----------------------------------------------------------------------------
# Forward wrapper: embedding gather/flatten glue + pallas_call.
# ----------------------------------------------------------------------------
@functools.partial(jax.jit, static_argnames=("max_len", "vocab_size"))
def discrete_non_rep_sender_forward(x_idx, packed, *, max_len, vocab_size):
    B = x_idx.shape[0]
    V = vocab_size
    H = packed["w_in_t"].shape[1]

    # Glue: input-embedding gather + flatten (stays outside the kernel).
    x_flat = (packed["input_embedding"][x_idx]
              .reshape(B, -1).astype(packed["w_in_t"].dtype))

    kernel = functools.partial(_sender_kernel, max_len, V, H)
    seq, logits_flat = pl.pallas_call(
        kernel,
        out_shape=(
            jax.ShapeDtypeStruct((B, max_len), jnp.int32),
            # Lane-dense logits slab; reshaped to (B, max_len, V) below.
            jax.ShapeDtypeStruct((B, max_len * V), jnp.float32),
        ),
    )(x_flat, packed["w_in_t"], packed["slab"])

    return seq, logits_flat.reshape(B, max_len, V)


# ----------------------------------------------------------------------------
# Pure-JAX reference (mirrors the PyTorch forward, eval mode, message=None).
# ----------------------------------------------------------------------------
def reference_forward(x_idx, params, *, max_len):
    B = x_idx.shape[0]
    H = params["w_hh"].shape[1]
    x_flat = params["input_embedding"][x_idx].reshape(B, -1)
    h = x_flat @ params["w_in"].T + params["b_in"]
    c = jnp.zeros_like(h)
    emb = jnp.broadcast_to(params["sos"], (B, params["sos"].shape[0]))
    w_ih, w_hh = params["w_ih"], params["w_hh"]
    b = params["b_ih"] + params["b_hh"]
    seqs, logs = [], []
    for _ in range(max_len):
        z = emb @ w_ih.T + h @ w_hh.T + b
        i_g = jax.nn.sigmoid(z[:, 0 * H:1 * H])
        f_g = jax.nn.sigmoid(z[:, 1 * H:2 * H])
        g_g = jnp.tanh(z[:, 2 * H:3 * H])
        o_g = jax.nn.sigmoid(z[:, 3 * H:4 * H])
        c = f_g * c + i_g * g_g
        h = o_g * jnp.tanh(c)
        logit = h @ params["w_out"].T + params["b_out"]
        sym = jnp.argmax(logit, axis=-1).astype(jnp.int32)
        emb = params["output_embedding"][sym]
        seqs.append(sym)
        logs.append(logit)
    return jnp.stack(seqs, axis=1), jnp.stack(logs, axis=1)


# ----------------------------------------------------------------------------
# Deterministic parameter init + run.
# ----------------------------------------------------------------------------
def init_params(key, *, num_elems, num_attrs, vocab_size, input_embedding_dim,
                output_embedding_dim, hidden_size):
    ks = jax.random.split(key, 12)
    s = 0.1
    return {
        "input_embedding": s * jax.random.normal(
            ks[0], (num_elems, input_embedding_dim), jnp.float32),
        "output_embedding": s * jax.random.normal(
            ks[1], (vocab_size, output_embedding_dim), jnp.float32),
        "w_in": s * jax.random.normal(
            ks[2], (hidden_size, input_embedding_dim * num_attrs), jnp.float32),
        "b_in": s * jax.random.normal(ks[3], (hidden_size,), jnp.float32),
        "w_ih": s * jax.random.normal(
            ks[4], (4 * hidden_size, output_embedding_dim), jnp.float32),
        "w_hh": s * jax.random.normal(
            ks[5], (4 * hidden_size, hidden_size), jnp.float32),
        "b_ih": s * jax.random.normal(ks[6], (4 * hidden_size,), jnp.float32),
        "b_hh": s * jax.random.normal(ks[7], (4 * hidden_size,), jnp.float32),
        "w_out": s * jax.random.normal(
            ks[8], (vocab_size, hidden_size), jnp.float32),
        "b_out": s * jax.random.normal(ks[9], (vocab_size,), jnp.float32),
        "sos": s * jax.random.normal(ks[10], (output_embedding_dim,), jnp.float32),
    }


if __name__ == "__main__":
    num_elems = 10
    num_attrs = 4
    vocab_size = 16
    max_len = 8
    input_embedding_dim = 16
    output_embedding_dim = 16
    hidden_size = 32
    batch = 2

    key = jax.random.PRNGKey(0)
    k_param, k_x = jax.random.split(key)
    params = init_params(
        k_param,
        num_elems=num_elems, num_attrs=num_attrs, vocab_size=vocab_size,
        input_embedding_dim=input_embedding_dim,
        output_embedding_dim=output_embedding_dim, hidden_size=hidden_size)

    x = jax.random.randint(k_x, (batch, num_attrs), 0, num_elems, jnp.int32)

    # --- f32 path: strict check against the pure-JAX reference -------------
    packed = pack_params(params)                     # one-time weight fusion
    sequence, logits = discrete_non_rep_sender_forward(
        x, packed, max_len=max_len, vocab_size=vocab_size)
    jax.block_until_ready((sequence, logits))

    ref_seq, ref_logits = reference_forward(x, params, max_len=max_len)
    np.testing.assert_array_equal(np.asarray(sequence), np.asarray(ref_seq))
    np.testing.assert_allclose(np.asarray(logits), np.asarray(ref_logits),
                               rtol=1e-4, atol=1e-5)
    assert sequence.shape == (batch, max_len)
    assert logits.shape == (batch, max_len, vocab_size)

    # --- bf16-weight path: smoke test (MXU operands bf16, f32 accumulate) ---
    packed_bf16 = pack_params(params, weight_dtype=jnp.bfloat16)
    seq_b, logits_b = discrete_non_rep_sender_forward(
        x, packed_bf16, max_len=max_len, vocab_size=vocab_size)
    jax.block_until_ready((seq_b, logits_b))
    assert seq_b.shape == (batch, max_len)
    assert logits_b.shape == (batch, max_len, vocab_size)
    assert bool(jnp.all(jnp.isfinite(logits_b)))
    assert bool(jnp.all((seq_b >= 0) & (seq_b < vocab_size)))

    print("KERNEL_OK")
</pallas_src>

<mosaic_0001>
module attributes {stable_mosaic.version = 11 : i64} {
  func.func @_sender_kernel(%arg0: memref<2x64xf32, #tpu.memory_space<vmem>>, %arg1: memref<64x32xf32, #tpu.memory_space<vmem>>, %arg2: memref<88x128xf32, #tpu.memory_space<vmem>>, %arg3: memref<2x8xi32, #tpu.memory_space<vmem>>, %arg4: memref<2x128xf32, #tpu.memory_space<vmem>>) attributes {dimension_semantics = [], scalar_prefetch = 0 : i64, scratch_operands = 0 : i64, tpu.core_type = #tpu.core_type<tc>} {
    %c0 = arith.constant 0 : index
    %c0_0 = arith.constant 0 : index
    %0 = vector.load %arg2[%c0, %c0_0] : memref<88x128xf32, #tpu.memory_space<vmem>>, vector<48x128xf32>
    %c16 = arith.constant 16 : index
    %c0_1 = arith.constant 0 : index
    %1 = vector.load %arg2[%c16, %c0_1] : memref<88x128xf32, #tpu.memory_space<vmem>>, vector<32x128xf32>
    %c48 = arith.constant 48 : index
    %c0_2 = arith.constant 0 : index
    %2 = vector.load %arg2[%c48, %c0_2] : memref<88x128xf32, #tpu.memory_space<vmem>>, vector<1x128xf32>
    %c49 = arith.constant 49 : index
    %c0_3 = arith.constant 0 : index
    %3 = vector.load %arg2[%c49, %c0_3] : memref<88x128xf32, #tpu.memory_space<vmem>>, vector<1x16xf32>
    %c50 = arith.constant 50 : index
    %c0_4 = arith.constant 0 : index
    %4 = vector.load %arg2[%c50, %c0_4] : memref<88x128xf32, #tpu.memory_space<vmem>>, vector<1x32xf32>
    %c56 = arith.constant 56 : index
    %c0_5 = arith.constant 0 : index
    %5 = vector.load %arg2[%c56, %c0_5] : memref<88x128xf32, #tpu.memory_space<vmem>>, vector<32x16xf32>
    %c0_6 = arith.constant 0 : index
    %c0_7 = arith.constant 0 : index
    %6 = vector.load %arg0[%c0_6, %c0_7] : memref<2x64xf32, #tpu.memory_space<vmem>>, vector<2x64xf32>
    %c0_8 = arith.constant 0 : index
    %c0_9 = arith.constant 0 : index
    %7 = vector.load %arg1[%c0_8, %c0_9] : memref<64x32xf32, #tpu.memory_space<vmem>>, vector<64x32xf32>
    %cst = arith.constant dense<0.000000e+00> : vector<2x32xf32>
    %8 = tpu.matmul %6, %7, %cst {dimension_numbers = #tpu.dot_dimension_numbers<[1], [0], [0], [1], [0, 0, 1, 1], [], []>} : vector<2x64xf32>, vector<64x32xf32>, vector<2x32xf32> -> vector<2x32xf32>
    %9 = vector.broadcast %4 : vector<1x32xf32> to vector<2x32xf32>
    %10 = arith.addf %8, %9 : vector<2x32xf32>
    %cst_10 = arith.constant 0.000000e+00 : f32
    %11 = vector.broadcast %cst_10 : f32 to vector<2x32xf32>
    %12 = tpu.iota {dimensions = array<i32: 1>} : vector<2x16xi32>
    %cst_11 = arith.constant dense<0.000000e+00> : vector<2x128xf32>
    %13 = tpu.matmul %10, %1, %cst_11 {dimension_numbers = #tpu.dot_dimension_numbers<[1], [0], [0], [1], [0, 0, 1, 1], [], []>} : vector<2x32xf32>, vector<32x128xf32>, vector<2x128xf32> -> vector<2x128xf32>
    %14 = vector.broadcast %2 : vector<1x128xf32> to vector<2x128xf32>
    %15 = arith.addf %14, %13 : vector<2x128xf32>
    %16 = arith.negf %15 : vector<2x128xf32>
    %17 = math.exp %16 : vector<2x128xf32>
    %cst_12 = arith.constant 1.000000e+00 : f32
    %18 = vector.broadcast %cst_12 : f32 to vector<2x128xf32>
    %19 = arith.addf %18, %17 : vector<2x128xf32>
    %20 = arith.divf %18, %19 : vector<2x128xf32>
    %21 = math.tanh %15 : vector<2x128xf32>
    %22 = vector.extract_strided_slice %20 {offsets = [0, 0], sizes = [2, 32], strides = [1, 1]} : vector<2x128xf32> to vector<2x32xf32>
    %23 = vector.extract_strided_slice %20 {offsets = [0, 32], sizes = [2, 32], strides = [1, 1]} : vector<2x128xf32> to vector<2x32xf32>
    %24 = vector.extract_strided_slice %21 {offsets = [0, 64], sizes = [2, 32], strides = [1, 1]} : vector<2x128xf32> to vector<2x32xf32>
    %25 = vector.extract_strided_slice %20 {offsets = [0, 96], sizes = [2, 32], strides = [1, 1]} : vector<2x128xf32> to vector<2x32xf32>
    %26 = arith.mulf %23, %11 : vector<2x32xf32>
    %27 = arith.mulf %22, %24 : vector<2x32xf32>
    %28 = arith.addf %26, %27 : vector<2x32xf32>
    %29 = math.tanh %28 : vector<2x32xf32>
    %30 = arith.mulf %25, %29 : vector<2x32xf32>
    %cst_13 = arith.constant dense<0.000000e+00> : vector<2x16xf32>
    %31 = tpu.matmul %30, %5, %cst_13 {dimension_numbers = #tpu.dot_dimension_numbers<[1], [0], [0], [1], [0, 0, 1, 1], [], []>} : vector<2x32xf32>, vector<32x16xf32>, vector<2x16xf32> -> vector<2x16xf32>
    %32 = vector.broadcast %3 : vector<1x16xf32> to vector<2x16xf32>
    %33 = arith.addf %31, %32 : vector<2x16xf32>
    %cst_14 = arith.constant dense<0xFF800000> : vector<2xf32>
    %34 = vector.multi_reduction <maximumf>, %33, %cst_14 [1] : vector<2x16xf32> to vector<2xf32>
    %35 = vector.shape_cast %34 : vector<2xf32> to vector<2x1xf32>
    %36 = vector.broadcast %35 : vector<2x1xf32> to vector<2x16xf32>
    %37 = arith.cmpf oeq, %33, %36 : vector<2x16xf32>
    %c16_i32 = arith.constant 16 : i32
    %38 = vector.broadcast %c16_i32 : i32 to vector<2x16xi32>
    %39 = arith.select %37, %12, %38 : vector<2x16xi1>, vector<2x16xi32>
    %cst_15 = arith.constant dense<2147483647> : vector<2xi32>
    %40 = vector.multi_reduction <minsi>, %39, %cst_15 [1] : vector<2x16xi32> to vector<2xi32>
    %41 = vector.shape_cast %40 : vector<2xi32> to vector<2x1xi32>
    %42 = vector.broadcast %41 : vector<2x1xi32> to vector<2x16xi32>
    %43 = arith.cmpi eq, %12, %42 : vector<2x16xi32>
    %44 = arith.extui %43 : vector<2x16xi1> to vector<2x16xi32>
    %45 = arith.sitofp %44 : vector<2x16xi32> to vector<2x16xf32>
    %46 = tpu.concatenate %45, %30 in 1 : vector<2x16xf32>, vector<2x32xf32> -> vector<2x48xf32>
    %cst_16 = arith.constant dense<0.000000e+00> : vector<2x128xf32>
    %47 = tpu.matmul %46, %0, %cst_16 {dimension_numbers = #tpu.dot_dimension_numbers<[1], [0], [0], [1], [0, 0, 1, 1], [], []>} : vector<2x48xf32>, vector<48x128xf32>, vector<2x128xf32> -> vector<2x128xf32>
    %48 = arith.negf %47 : vector<2x128xf32>
    %49 = math.exp %48 : vector<2x128xf32>
    %cst_17 = arith.constant 1.000000e+00 : f32
    %50 = vector.broadcast %cst_17 : f32 to vector<2x128xf32>
    %51 = arith.addf %50, %49 : vector<2x128xf32>
    %52 = arith.divf %50, %51 : vector<2x128xf32>
    %53 = math.tanh %47 : vector<2x128xf32>
    %54 = vector.extract_strided_slice %52 {offsets = [0, 0], sizes = [2, 32], strides = [1, 1]} : vector<2x128xf32> to vector<2x32xf32>
    %55 = vector.extract_strided_slice %52 {offsets = [0, 32], sizes = [2, 32], strides = [1, 1]} : vector<2x128xf32> to vector<2x32xf32>
    %56 = vector.extract_strided_slice %53 {offsets = [0, 64], sizes = [2, 32], strides = [1, 1]} : vector<2x128xf32> to vector<2x32xf32>
    %57 = vector.extract_strided_slice %52 {offsets = [0, 96], sizes = [2, 32], strides = [1, 1]} : vector<2x128xf32> to vector<2x32xf32>
    %58 = arith.mulf %55, %28 : vector<2x32xf32>
    %59 = arith.mulf %54, %56 : vector<2x32xf32>
    %60 = arith.addf %58, %59 : vector<2x32xf32>
    %61 = math.tanh %60 : vector<2x32xf32>
    %62 = arith.mulf %57, %61 : vector<2x32xf32>
    %cst_18 = arith.constant dense<0.000000e+00> : vector<2x16xf32>
    %63 = tpu.matmul %62, %5, %cst_18 {dimension_numbers = #tpu.dot_dimension_numbers<[1], [0], [0], [1], [0, 0, 1, 1], [], []>} : vector<2x32xf32>, vector<32x16xf32>, vector<2x16xf32> -> vector<2x16xf32>
    %64 = vector.broadcast %3 : vector<1x16xf32> to vector<2x16xf32>
    %65 = arith.addf %63, %64 : vector<2x16xf32>
    %cst_19 = arith.constant dense<0xFF800000> : vector<2xf32>
    %66 = vector.multi_reduction <maximumf>, %65, %cst_19 [1] : vector<2x16xf32> to vector<2xf32>
    %67 = vector.shape_cast %66 : vector<2xf32> to vector<2x1xf32>
    %68 = vector.broadcast %67 : vector<2x1xf32> to vector<2x16xf32>
    %69 = arith.cmpf oeq, %65, %68 : vector<2x16xf32>
    %c16_i32_20 = arith.constant 16 : i32
    %70 = vector.broadcast %c16_i32_20 : i32 to vector<2x16xi32>
    %71 = arith.select %69, %12, %70 : vector<2x16xi1>, vector<2x16xi32>
    %cst_21 = arith.constant dense<2147483647> : vector<2xi32>
    %72 = vector.multi_reduction <minsi>, %71, %cst_21 [1] : vector<2x16xi32> to vector<2xi32>
    %73 = vector.shape_cast %72 : vector<2xi32> to vector<2x1xi32>
    %74 = vector.broadcast %73 : vector<2x1xi32> to vector<2x16xi32>
    %75 = arith.cmpi eq, %12, %74 : vector<2x16xi32>
    %76 = arith.extui %75 : vector<2x16xi1> to vector<2x16xi32>
    %77 = arith.sitofp %76 : vector<2x16xi32> to vector<2x16xf32>
    %78 = tpu.concatenate %77, %62 in 1 : vector<2x16xf32>, vector<2x32xf32> -> vector<2x48xf32>
    %cst_22 = arith.constant dense<0.000000e+00> : vector<2x128xf32>
    %79 = tpu.matmul %78, %0, %cst_22 {dimension_numbers = #tpu.dot_dimension_numbers<[1], [0], [0], [1], [0, 0, 1, 1], [], []>} : vector<2x48xf32>, vector<48x128xf32>, vector<2x128xf32> -> vector<2x128xf32>
    %80 = arith.negf %79 : vector<2x128xf32>
    %81 = math.exp %80 : vector<2x128xf32>
    %cst_23 = arith.constant 1.000000e+00 : f32
    %82 = vector.broadcast %cst_23 : f32 to vector<2x128xf32>
    %83 = arith.addf %82, %81 : vector<2x128xf32>
    %84 = arith.divf %82, %83 : vector<2x128xf32>
    %85 = math.tanh %79 : vector<2x128xf32>
    %86 = vector.extract_strided_slice %84 {offsets = [0, 0], sizes = [2, 32], strides = [1, 1]} : vector<2x128xf32> to vector<2x32xf32>
    %87 = vector.extract_strided_slice %84 {offsets = [0, 32], sizes = [2, 32], strides = [1, 1]} : vector<2x128xf32> to vector<2x32xf32>
    %88 = vector.extract_strided_slice %85 {offsets = [0, 64], sizes = [2, 32], strides = [1, 1]} : vector<2x128xf32> to vector<2x32xf32>
    %89 = vector.extract_strided_slice %84 {offsets = [0, 96], sizes = [2, 32], strides = [1, 1]} : vector<2x128xf32> to vector<2x32xf32>
    %90 = arith.mulf %87, %60 : vector<2x32xf32>
    %91 = arith.mulf %86, %88 : vector<2x32xf32>
    %92 = arith.addf %90, %91 : vector<2x32xf32>
    %93 = math.tanh %92 : vector<2x32xf32>
    %94 = arith.mulf %89, %93 : vector<2x32xf32>
    %cst_24 = arith.constant dense<0.000000e+00> : vector<2x16xf32>
    %95 = tpu.matmul %94, %5, %cst_24 {dimension_numbers = #tpu.dot_dimension_numbers<[1], [0], [0], [1], [0, 0, 1, 1], [], []>} : vector<2x32xf32>, vector<32x16xf32>, vector<2x16xf32> -> vector<2x16xf32>
    %96 = vector.broadcast %3 : vector<1x16xf32> to vector<2x16xf32>
    %97 = arith.addf %95, %96 : vector<2x16xf32>
    %cst_25 = arith.constant dense<0xFF800000> : vector<2xf32>
    %98 = vector.multi_reduction <maximumf>, %97, %cst_25 [1] : vector<2x16xf32> to vector<2xf32>
    %99 = vector.shape_cast %98 : vector<2xf32> to vector<2x1xf32>
    %100 = vector.broadcast %99 : vector<2x1xf32> to vector<2x16xf32>
    %101 = arith.cmpf oeq, %97, %100 : vector<2x16xf32>
    %c16_i32_26 = arith.constant 16 : i32
    %102 = vector.broadcast %c16_i32_26 : i32 to vector<2x16xi32>
    %103 = arith.select %101, %12, %102 : vector<2x16xi1>, vector<2x16xi32>
    %cst_27 = arith.constant dense<2147483647> : vector<2xi32>
    %104 = vector.multi_reduction <minsi>, %103, %cst_27 [1] : vector<2x16xi32> to vector<2xi32>
    %105 = vector.shape_cast %104 : vector<2xi32> to vector<2x1xi32>
    %106 = vector.broadcast %105 : vector<2x1xi32> to vector<2x16xi32>
    %107 = arith.cmpi eq, %12, %106 : vector<2x16xi32>
    %108 = arith.extui %107 : vector<2x16xi1> to vector<2x16xi32>
    %109 = arith.sitofp %108 : vector<2x16xi32> to vector<2x16xf32>
    %110 = tpu.concatenate %109, %94 in 1 : vector<2x16xf32>, vector<2x32xf32> -> vector<2x48xf32>
    %cst_28 = arith.constant dense<0.000000e+00> : vector<2x128xf32>
    %111 = tpu.matmul %110, %0, %cst_28 {dimension_numbers = #tpu.dot_dimension_numbers<[1], [0], [0], [1], [0, 0, 1, 1], [], []>} : vector<2x48xf32>, vector<48x128xf32>, vector<2x128xf32> -> vector<2x128xf32>
    %112 = arith.negf %111 : vector<2x128xf32>
    %113 = math.exp %112 : vector<2x128xf32>
    %cst_29 = arith.constant 1.000000e+00 : f32
    %114 = vector.broadcast %cst_29 : f32 to vector<2x128xf32>
    %115 = arith.addf %114, %113 : vector<2x128xf32>
    %116 = arith.divf %114, %115 : vector<2x128xf32>
    %117 = math.tanh %111 : vector<2x128xf32>
    %118 = vector.extract_strided_slice %116 {offsets = [0, 0], sizes = [2, 32], strides = [1, 1]} : vector<2x128xf32> to vector<2x32xf32>
    %119 = vector.extract_strided_slice %116 {offsets = [0, 32], sizes = [2, 32], strides = [1, 1]} : vector<2x128xf32> to vector<2x32xf32>
    %120 = vector.extract_strided_slice %117 {offsets = [0, 64], sizes = [2, 32], strides = [1, 1]} : vector<2x128xf32> to vector<2x32xf32>
    %121 = vector.extract_strided_slice %116 {offsets = [0, 96], sizes = [2, 32], strides = [1, 1]} : vector<2x128xf32> to vector<2x32xf32>
    %122 = arith.mulf %119, %92 : vector<2x32xf32>
    %123 = arith.mulf %118, %120 : vector<2x32xf32>
    %124 = arith.addf %122, %123 : vector<2x32xf32>
    %125 = math.tanh %124 : vector<2x32xf32>
    %126 = arith.mulf %121, %125 : vector<2x32xf32>
    %cst_30 = arith.constant dense<0.000000e+00> : vector<2x16xf32>
    %127 = tpu.matmul %126, %5, %cst_30 {dimension_numbers = #tpu.dot_dimension_numbers<[1], [0], [0], [1], [0, 0, 1, 1], [], []>} : vector<2x32xf32>, vector<32x16xf32>, vector<2x16xf32> -> vector<2x16xf32>
    %128 = vector.broadcast %3 : vector<1x16xf32> to vector<2x16xf32>
    %129 = arith.addf %127, %128 : vector<2x16xf32>
    %cst_31 = arith.constant dense<0xFF800000> : vector<2xf32>
    %130 = vector.multi_reduction <maximumf>, %129, %cst_31 [1] : vector<2x16xf32> to vector<2xf32>
    %131 = vector.shape_cast %130 : vector<2xf32> to vector<2x1xf32>
    %132 = vector.broadcast %131 : vector<2x1xf32> to vector<2x16xf32>
    %133 = arith.cmpf oeq, %129, %132 : vector<2x16xf32>
    %c16_i32_32 = arith.constant 16 : i32
    %134 = vector.broadcast %c16_i32_32 : i32 to vector<2x16xi32>
    %135 = arith.select %133, %12, %134 : vector<2x16xi1>, vector<2x16xi32>
    %cst_33 = arith.constant dense<2147483647> : vector<2xi32>
    %136 = vector.multi_reduction <minsi>, %135, %cst_33 [1] : vector<2x16xi32> to vector<2xi32>
    %137 = vector.shape_cast %136 : vector<2xi32> to vector<2x1xi32>
    %138 = vector.broadcast %137 : vector<2x1xi32> to vector<2x16xi32>
    %139 = arith.cmpi eq, %12, %138 : vector<2x16xi32>
    %140 = arith.extui %139 : vector<2x16xi1> to vector<2x16xi32>
    %141 = arith.sitofp %140 : vector<2x16xi32> to vector<2x16xf32>
    %142 = tpu.concatenate %141, %126 in 1 : vector<2x16xf32>, vector<2x32xf32> -> vector<2x48xf32>
    %cst_34 = arith.constant dense<0.000000e+00> : vector<2x128xf32>
    %143 = tpu.matmul %142, %0, %cst_34 {dimension_numbers = #tpu.dot_dimension_numbers<[1], [0], [0], [1], [0, 0, 1, 1], [], []>} : vector<2x48xf32>, vector<48x128xf32>, vector<2x128xf32> -> vector<2x128xf32>
    %144 = arith.negf %143 : vector<2x128xf32>
    %145 = math.exp %144 : vector<2x128xf32>
    %cst_35 = arith.constant 1.000000e+00 : f32
    %146 = vector.broadcast %cst_35 : f32 to vector<2x128xf32>
    %147 = arith.addf %146, %145 : vector<2x128xf32>
    %148 = arith.divf %146, %147 : vector<2x128xf32>
    %149 = math.tanh %143 : vector<2x128xf32>
    %150 = vector.extract_strided_slice %148 {offsets = [0, 0], sizes = [2, 32], strides = [1, 1]} : vector<2x128xf32> to vector<2x32xf32>
    %151 = vector.extract_strided_slice %148 {offsets = [0, 32], sizes = [2, 32], strides = [1, 1]} : vector<2x128xf32> to vector<2x32xf32>
    %152 = vector.extract_strided_slice %149 {offsets = [0, 64], sizes = [2, 32], strides = [1, 1]} : vector<2x128xf32> to vector<2x32xf32>
    %153 = vector.extract_strided_slice %148 {offsets = [0, 96], sizes = [2, 32], strides = [1, 1]} : vector<2x128xf32> to vector<2x32xf32>
    %154 = arith.mulf %151, %124 : vector<2x32xf32>
    %155 = arith.mulf %150, %152 : vector<2x32xf32>
    %156 = arith.addf %154, %155 : vector<2x32xf32>
    %157 = math.tanh %156 : vector<2x32xf32>
    %158 = arith.mulf %153, %157 : vector<2x32xf32>
    %cst_36 = arith.constant dense<0.000000e+00> : vector<2x16xf32>
    %159 = tpu.matmul %158, %5, %cst_36 {dimension_numbers = #tpu.dot_dimension_numbers<[1], [0], [0], [1], [0, 0, 1, 1], [], []>} : vector<2x32xf32>, vector<32x16xf32>, vector<2x16xf32> -> vector<2x16xf32>
    %160 = vector.broadcast %3 : vector<1x16xf32> to vector<2x16xf32>
    %161 = arith.addf %159, %160 : vector<2x16xf32>
    %cst_37 = arith.constant dense<0xFF800000> : vector<2xf32>
    %162 = vector.multi_reduction <maximumf>, %161, %cst_37 [1] : vector<2x16xf32> to vector<2xf32>
    %163 = vector.shape_cast %162 : vector<2xf32> to vector<2x1xf32>
    %164 = vector.broadcast %163 : vector<2x1xf32> to vector<2x16xf32>
    %165 = arith.cmpf oeq, %161, %164 : vector<2x16xf32>
    %c16_i32_38 = arith.constant 16 : i32
    %166 = vector.broadcast %c16_i32_38 : i32 to vector<2x16xi32>
    %167 = arith.select %165, %12, %166 : vector<2x16xi1>, vector<2x16xi32>
    %cst_39 = arith.constant dense<2147483647> : vector<2xi32>
    %168 = vector.multi_reduction <minsi>, %167, %cst_39 [1] : vector<2x16xi32> to vector<2xi32>
    %169 = vector.shape_cast %168 : vector<2xi32> to vector<2x1xi32>
    %170 = vector.broadcast %169 : vector<2x1xi32> to vector<2x16xi32>
    %171 = arith.cmpi eq, %12, %170 : vector<2x16xi32>
    %172 = arith.extui %171 : vector<2x16xi1> to vector<2x16xi32>
    %173 = arith.sitofp %172 : vector<2x16xi32> to vector<2x16xf32>
    %174 = tpu.concatenate %173, %158 in 1 : vector<2x16xf32>, vector<2x32xf32> -> vector<2x48xf32>
    %cst_40 = arith.constant dense<0.000000e+00> : vector<2x128xf32>
    %175 = tpu.matmul %174, %0, %cst_40 {dimension_numbers = #tpu.dot_dimension_numbers<[1], [0], [0], [1], [0, 0, 1, 1], [], []>} : vector<2x48xf32>, vector<48x128xf32>, vector<2x128xf32> -> vector<2x128xf32>
    %176 = arith.negf %175 : vector<2x128xf32>
    %177 = math.exp %176 : vector<2x128xf32>
    %cst_41 = arith.constant 1.000000e+00 : f32
    %178 = vector.broadcast %cst_41 : f32 to vector<2x128xf32>
    %179 = arith.addf %178, %177 : vector<2x128xf32>
    %180 = arith.divf %178, %179 : vector<2x128xf32>
    %181 = math.tanh %175 : vector<2x128xf32>
    %182 = vector.extract_strided_slice %180 {offsets = [0, 0], sizes = [2, 32], strides = [1, 1]} : vector<2x128xf32> to vector<2x32xf32>
    %183 = vector.extract_strided_slice %180 {offsets = [0, 32], sizes = [2, 32], strides = [1, 1]} : vector<2x128xf32> to vector<2x32xf32>
    %184 = vector.extract_strided_slice %181 {offsets = [0, 64], sizes = [2, 32], strides = [1, 1]} : vector<2x128xf32> to vector<2x32xf32>
    %185 = vector.extract_strided_slice %180 {offsets = [0, 96], sizes = [2, 32], strides = [1, 1]} : vector<2x128xf32> to vector<2x32xf32>
    %186 = arith.mulf %183, %156 : vector<2x32xf32>
    %187 = arith.mulf %182, %184 : vector<2x32xf32>
    %188 = arith.addf %186, %187 : vector<2x32xf32>
    %189 = math.tanh %188 : vector<2x32xf32>
    %190 = arith.mulf %185, %189 : vector<2x32xf32>
    %cst_42 = arith.constant dense<0.000000e+00> : vector<2x16xf32>
    %191 = tpu.matmul %190, %5, %cst_42 {dimension_numbers = #tpu.dot_dimension_numbers<[1], [0], [0], [1], [0, 0, 1, 1], [], []>} : vector<2x32xf32>, vector<32x16xf32>, vector<2x16xf32> -> vector<2x16xf32>
    %192 = vector.broadcast %3 : vector<1x16xf32> to vector<2x16xf32>
    %193 = arith.addf %191, %192 : vector<2x16xf32>
    %cst_43 = arith.constant dense<0xFF800000> : vector<2xf32>
    %194 = vector.multi_reduction <maximumf>, %193, %cst_43 [1] : vector<2x16xf32> to vector<2xf32>
    %195 = vector.shape_cast %194 : vector<2xf32> to vector<2x1xf32>
    %196 = vector.broadcast %195 : vector<2x1xf32> to vector<2x16xf32>
    %197 = arith.cmpf oeq, %193, %196 : vector<2x16xf32>
    %c16_i32_44 = arith.constant 16 : i32
    %198 = vector.broadcast %c16_i32_44 : i32 to vector<2x16xi32>
    %199 = arith.select %197, %12, %198 : vector<2x16xi1>, vector<2x16xi32>
    %cst_45 = arith.constant dense<2147483647> : vector<2xi32>
    %200 = vector.multi_reduction <minsi>, %199, %cst_45 [1] : vector<2x16xi32> to vector<2xi32>
    %201 = vector.shape_cast %200 : vector<2xi32> to vector<2x1xi32>
    %202 = vector.broadcast %201 : vector<2x1xi32> to vector<2x16xi32>
    %203 = arith.cmpi eq, %12, %202 : vector<2x16xi32>
    %204 = arith.extui %203 : vector<2x16xi1> to vector<2x16xi32>
    %205 = arith.sitofp %204 : vector<2x16xi32> to vector<2x16xf32>
    %206 = tpu.concatenate %205, %190 in 1 : vector<2x16xf32>, vector<2x32xf32> -> vector<2x48xf32>
    %cst_46 = arith.constant dense<0.000000e+00> : vector<2x128xf32>
    %207 = tpu.matmul %206, %0, %cst_46 {dimension_numbers = #tpu.dot_dimension_numbers<[1], [0], [0], [1], [0, 0, 1, 1], [], []>} : vector<2x48xf32>, vector<48x128xf32>, vector<2x128xf32> -> vector<2x128xf32>
    %208 = arith.negf %207 : vector<2x128xf32>
    %209 = math.exp %208 : vector<2x128xf32>
    %cst_47 = arith.constant 1.000000e+00 : f32
    %210 = vector.broadcast %cst_47 : f32 to vector<2x128xf32>
    %211 = arith.addf %210, %209 : vector<2x128xf32>
    %212 = arith.divf %210, %211 : vector<2x128xf32>
    %213 = math.tanh %207 : vector<2x128xf32>
    %214 = vector.extract_strided_slice %212 {offsets = [0, 0], sizes = [2, 32], strides = [1, 1]} : vector<2x128xf32> to vector<2x32xf32>
    %215 = vector.extract_strided_slice %212 {offsets = [0, 32], sizes = [2, 32], strides = [1, 1]} : vector<2x128xf32> to vector<2x32xf32>
    %216 = vector.extract_strided_slice %213 {offsets = [0, 64], sizes = [2, 32], strides = [1, 1]} : vector<2x128xf32> to vector<2x32xf32>
    %217 = vector.extract_strided_slice %212 {offsets = [0, 96], sizes = [2, 32], strides = [1, 1]} : vector<2x128xf32> to vector<2x32xf32>
    %218 = arith.mulf %215, %188 : vector<2x32xf32>
    %219 = arith.mulf %214, %216 : vector<2x32xf32>
    %220 = arith.addf %218, %219 : vector<2x32xf32>
    %221 = math.tanh %220 : vector<2x32xf32>
    %222 = arith.mulf %217, %221 : vector<2x32xf32>
    %cst_48 = arith.constant dense<0.000000e+00> : vector<2x16xf32>
    %223 = tpu.matmul %222, %5, %cst_48 {dimension_numbers = #tpu.dot_dimension_numbers<[1], [0], [0], [1], [0, 0, 1, 1], [], []>} : vector<2x32xf32>, vector<32x16xf32>, vector<2x16xf32> -> vector<2x16xf32>
    %224 = vector.broadcast %3 : vector<1x16xf32> to vector<2x16xf32>
    %225 = arith.addf %223, %224 : vector<2x16xf32>
    %cst_49 = arith.constant dense<0xFF800000> : vector<2xf32>
    %226 = vector.multi_reduction <maximumf>, %225, %cst_49 [1] : vector<2x16xf32> to vector<2xf32>
    %227 = vector.shape_cast %226 : vector<2xf32> to vector<2x1xf32>
    %228 = vector.broadcast %227 : vector<2x1xf32> to vector<2x16xf32>
    %229 = arith.cmpf oeq, %225, %228 : vector<2x16xf32>
    %c16_i32_50 = arith.constant 16 : i32
    %230 = vector.broadcast %c16_i32_50 : i32 to vector<2x16xi32>
    %231 = arith.select %229, %12, %230 : vector<2x16xi1>, vector<2x16xi32>
    %cst_51 = arith.constant dense<2147483647> : vector<2xi32>
    %232 = vector.multi_reduction <minsi>, %231, %cst_51 [1] : vector<2x16xi32> to vector<2xi32>
    %233 = vector.shape_cast %232 : vector<2xi32> to vector<2x1xi32>
    %234 = vector.broadcast %233 : vector<2x1xi32> to vector<2x16xi32>
    %235 = arith.cmpi eq, %12, %234 : vector<2x16xi32>
    %236 = arith.extui %235 : vector<2x16xi1> to vector<2x16xi32>
    %237 = arith.sitofp %236 : vector<2x16xi32> to vector<2x16xf32>
    %238 = tpu.concatenate %237, %222 in 1 : vector<2x16xf32>, vector<2x32xf32> -> vector<2x48xf32>
    %cst_52 = arith.constant dense<0.000000e+00> : vector<2x128xf32>
    %239 = tpu.matmul %238, %0, %cst_52 {dimension_numbers = #tpu.dot_dimension_numbers<[1], [0], [0], [1], [0, 0, 1, 1], [], []>} : vector<2x48xf32>, vector<48x128xf32>, vector<2x128xf32> -> vector<2x128xf32>
    %240 = arith.negf %239 : vector<2x128xf32>
    %241 = math.exp %240 : vector<2x128xf32>
    %cst_53 = arith.constant 1.000000e+00 : f32
    %242 = vector.broadcast %cst_53 : f32 to vector<2x128xf32>
    %243 = arith.addf %242, %241 : vector<2x128xf32>
    %244 = arith.divf %242, %243 : vector<2x128xf32>
    %245 = math.tanh %239 : vector<2x128xf32>
    %246 = vector.extract_strided_slice %244 {offsets = [0, 0], sizes = [2, 32], strides = [1, 1]} : vector<2x128xf32> to vector<2x32xf32>
    %247 = vector.extract_strided_slice %244 {offsets = [0, 32], sizes = [2, 32], strides = [1, 1]} : vector<2x128xf32> to vector<2x32xf32>
    %248 = vector.extract_strided_slice %245 {offsets = [0, 64], sizes = [2, 32], strides = [1, 1]} : vector<2x128xf32> to vector<2x32xf32>
    %249 = vector.extract_strided_slice %244 {offsets = [0, 96], sizes = [2, 32], strides = [1, 1]} : vector<2x128xf32> to vector<2x32xf32>
    %250 = arith.mulf %247, %220 : vector<2x32xf32>
    %251 = arith.mulf %246, %248 : vector<2x32xf32>
    %252 = arith.addf %250, %251 : vector<2x32xf32>
    %253 = math.tanh %252 : vector<2x32xf32>
    %254 = arith.mulf %249, %253 : vector<2x32xf32>
    %cst_54 = arith.constant dense<0.000000e+00> : vector<2x16xf32>
    %255 = tpu.matmul %254, %5, %cst_54 {dimension_numbers = #tpu.dot_dimension_numbers<[1], [0], [0], [1], [0, 0, 1, 1], [], []>} : vector<2x32xf32>, vector<32x16xf32>, vector<2x16xf32> -> vector<2x16xf32>
    %256 = vector.broadcast %3 : vector<1x16xf32> to vector<2x16xf32>
    %257 = arith.addf %255, %256 : vector<2x16xf32>
    %cst_55 = arith.constant dense<0xFF800000> : vector<2xf32>
    %258 = vector.multi_reduction <maximumf>, %257, %cst_55 [1] : vector<2x16xf32> to vector<2xf32>
    %259 = vector.shape_cast %258 : vector<2xf32> to vector<2x1xf32>
    %260 = vector.broadcast %259 : vector<2x1xf32> to vector<2x16xf32>
    %261 = arith.cmpf oeq, %257, %260 : vector<2x16xf32>
    %c16_i32_56 = arith.constant 16 : i32
    %262 = vector.broadcast %c16_i32_56 : i32 to vector<2x16xi32>
    %263 = arith.select %261, %12, %262 : vector<2x16xi1>, vector<2x16xi32>
    %cst_57 = arith.constant dense<2147483647> : vector<2xi32>
    %264 = vector.multi_reduction <minsi>, %263, %cst_57 [1] : vector<2x16xi32> to vector<2xi32>
    %265 = vector.shape_cast %264 : vector<2xi32> to vector<2x1xi32>
    %266 = tpu.concatenate %33, %65, %97, %129, %161, %193, %225, %257 in 1 : vector<2x16xf32>, vector<2x16xf32>, vector<2x16xf32>, vector<2x16xf32>, vector<2x16xf32>, vector<2x16xf32>, vector<2x16xf32>, vector<2x16xf32> -> vector<2x128xf32>
    %c0_58 = arith.constant 0 : index
    %c0_59 = arith.constant 0 : index
    %267 = vector.load %arg4[%c0_58, %c0_59] : memref<2x128xf32, #tpu.memory_space<vmem>>, vector<2x128xf32>
    tpu.vector_store %arg4[%c0_58, %c0_59], %266 {strides = array<i32>} : memref<2x128xf32, #tpu.memory_space<vmem>>, vector<2x128xf32>,
    %268 = tpu.concatenate %41, %73, %105, %137, %169, %201, %233, %265 in 1 : vector<2x1xi32>, vector<2x1xi32>, vector<2x1xi32>, vector<2x1xi32>, vector<2x1xi32>, vector<2x1xi32>, vector<2x1xi32>, vector<2x1xi32> -> vector<2x8xi32>
    %c0_60 = arith.constant 0 : index
    %c0_61 = arith.constant 0 : index
    %269 = vector.load %arg3[%c0_60, %c0_61] : memref<2x8xi32, #tpu.memory_space<vmem>>, vector<2x8xi32>
    tpu.vector_store %arg3[%c0_60, %c0_61], %268 {strides = array<i32>} : memref<2x8xi32, #tpu.memory_space<vmem>>, vector<2x8xi32>,
    return
  }
}

</mosaic_0001>

<llo_original>
// kernel: discrete_non_rep_sender_forward.1
$region0: #{discrete_non_rep_sender_forward.1}
  #allocation0 [shape = 'u32[]', space=smem, size = 0x4, offset = 0x4, fixed_abs, tag = 'smem constant byte address 0x4 - core index']
  #allocation1 [shape = 'u32[72,128]{1,0:T(1,128)}', space=vmem, size = 0x9000, scoped, tag = 'internal scratch']
  %s0 = inlined_call_operand.vmem [shape: f32[2,64], index: 0, kind: input, shape index: {}]
  %s1 = inlined_call_operand.vmem [shape: f32[64,32], index: 1, kind: input, shape index: {}]
  %s2 = inlined_call_operand.vmem [shape: f32[88,128], index: 2, kind: input, shape index: {}]
  %s3 = inlined_call_operand.hbm [shape: s32[2,8], index: 3, kind: output, shape index: {0}]
  %s4 = inlined_call_operand.vmem [shape: f32[2,128], index: 4, kind: output, shape index: {1}]
  %5 = xla_tuple %s3, %s4
  %s6 = sld [smem:[#allocation0]]
  $region30: #{discrete_non_rep_sender_forward.1} parent=0
    _
  %s8 = ssub.s32 1, %s6
  %s9 = scalar_select 0, %s8, %s6
  $region1: #{discrete_non_rep_sender_forward.1} parent=0
    #allocation2 [shape = 'u8[1024]{0}', space=vmem, size = 0x400, scoped, tag = 'output window, operand 0, single buffered']
    #allocation3 [shape = 's32[1]{0}', space=sflag, size = 0x4, scoped, tag = 'scoped memory for discrete_non_rep_sender_forward.1']
    %10 = vsyncpa [#allocation3], 0
    // Predicated region
    $region2: #{discrete_non_rep_sender_forward.1} parent=1 // pred_check
      _
    $region3: #{discrete_non_rep_sender_forward.1} parent=1 // pred_check_branch
      %12 = sbr.rel (0) target = $region5
    $region4: #{discrete_non_rep_sender_forward.1} parent=1 // pred_region
      _
    $region5: #{discrete_non_rep_sender_forward.1} parent=1 // pred_fallthru
      _
    // Predicated region
    $region6: #{discrete_non_rep_sender_forward.1} parent=1 // pred_check
      _
    $region7: #{discrete_non_rep_sender_forward.1} parent=1 // pred_check_branch
      %14 = sbr.rel (0) target = $region9
    $region8: #{discrete_non_rep_sender_forward.1} parent=1 // pred_region
      _
    $region9: #{discrete_non_rep_sender_forward.1} parent=1 // pred_fallthru
      _
    // Predicated region
    $region10: #{discrete_non_rep_sender_forward.1} parent=1 // pred_check
      _
    $region11: #{discrete_non_rep_sender_forward.1} parent=1 // pred_check_branch
      %16 = sbr.rel (0) target = $region13
    $region12: #{discrete_non_rep_sender_forward.1} parent=1 // pred_region
      _
    $region13: #{discrete_non_rep_sender_forward.1} parent=1 // pred_fallthru
      _
    %v17 = vld [vmem:[%s2] sm:$0xff]
    %v18 = vld [vmem:[%s2 + $0x8] sm:$0xff]
    %v19 = vld [vmem:[%s2 + $0x10] sm:$0xff]
    %v20 = vld [vmem:[%s2 + $0x18] sm:$0xff]
    %v21 = vld [vmem:[%s2 + $0x20] sm:$0xff]
    %v22 = vld [vmem:[%s2 + $0x28] sm:$0xff]
    %v23 = vld [vmem:[%s2 + $0x30] sm:$0x1]
    %v24 = vld [vmem:[%s2 + $0x31] sm:$0x1]
    %v25 = vld [vmem:[%s2 + $0x32] sm:$0x1]
    %v26 = vld [vmem:[%s2 + $0x38] sm:$0xff]
    %v27 = vld [vmem:[%s2 + $0x40] sm:$0xff]
    %v28 = vld [vmem:[%s2 + $0x48] sm:$0xff]
    %v29 = vld [vmem:[%s2 + $0x50] sm:$0xff]
    %v30 = vld [vmem:[%s0] sm:$0x3]
    %v31 = vld [vmem:[%s1] sm:$0xff]
    %v32 = vld [vmem:[%s1 + $0x8] sm:$0xff]
    %v33 = vld [vmem:[%s1 + $0x10] sm:$0xff]
    %v34 = vld [vmem:[%s1 + $0x18] sm:$0xff]
    %v35 = vld [vmem:[%s1 + $0x20] sm:$0xff]
    %v36 = vld [vmem:[%s1 + $0x28] sm:$0xff]
    %v37 = vld [vmem:[%s1 + $0x30] sm:$0xff]
    %v38 = vld [vmem:[%s1 + $0x38] sm:$0xff]
    %v39 = vperm.slane %v25, 0
    %vm40 = vcmask 523264
    %v42 = vsel %vm40, %v30, 0
    %44 = vmatpush.msra.mxu0 0.0
    %45 = vmatpush.msra.mxu0 0.0
    %46 = vmatpush.msra.mxu0 0.0
    %47 = vmatpush.msra.mxu0 0.0
    %48 = vmatpush.msra.mxu0 0.0
    %49 = vmatpush.msra.mxu0 0.0
    %50 = vmatpush.msra.mxu0 0.0
    %51 = vmatpush.msra.mxu0 0.0
    %52 = vmatpush.msra.mxu0 %v38
    %53 = vmatpush.msra.mxu0 %v37
    %54 = vmatpush.msra.mxu0 %v36
    %55 = vmatpush.msra.mxu0 %v35
    %56 = vmatpush.msra.mxu0 %v34
    %57 = vmatpush.msra.mxu0 %v33
    %58 = vmatpush.msra.mxu0 %v32
    %59 = vmatpush.msra.mxu0 %v31
    %60 = vmatmul.f32.gmra.mxu0 %v42
    %v61 = vpop.f32.mrf.mxu0
    %v62 = vadd.f32 %v39, %v61
    %63 = vdwg.mxu0
    %v64 = vlaneseq
    %v65 = vand.u32 %v64, 127
    %vm66 = vcmask 261120
    %v68 = vsel %vm66, %v62, 0
    %70 = vmatpush.msra.mxu0 0.0
    %71 = vmatpush.msra.mxu0 0.0
    %72 = vmatpush.msra.mxu0 0.0
    %73 = vmatpush.msra.mxu0 0.0
    %74 = vmatpush.msra.mxu0 0.0
    %75 = vmatpush.msra.mxu0 0.0
    %76 = vmatpush.msra.mxu0 0.0
    %77 = vmatpush.msra.mxu0 0.0
    %78 = vmatpush.msra.mxu0 0.0
    %79 = vmatpush.msra.mxu0 0.0
    %80 = vmatpush.msra.mxu0 0.0
    %81 = vmatpush.msra.mxu0 0.0
    %82 = vmatpush.msra.mxu0 %v22
    %83 = vmatpush.msra.mxu0 %v21
    %84 = vmatpush.msra.mxu0 %v20
    %85 = vmatpush.msra.mxu0 %v19
    %86 = vmatmul.f32.gmra.mxu0 %v68
    %v87 = vpop.f32.mrf.mxu0
    %v88 = vadd.f32 0.0, %v87
    %89 = vdwg.mxu0
    %v90 = vperm.slane %v23, 0
    %v91 = vadd.f32 %v90, %v88
    %v92 = vxor.u32 %v91, 2147483648
    %v93 = vmul.f32 %v92, 1.442695
    %v94 = vpow.pop %v93
    %v95 = vadd.f32 %v94, 1.0
    %v96 = vrcp.pop %v95
    %v97 = vmul.f32 %v95, %v96
    %v98 = vsub.f32 1.0, %v97
    %v99 = vmul.f32 %v96, %v98
    %v100 = vadd.f32 %v96, %v99
    %vm101 = vweird.f32 %v95
    %vm102 = vweird.f32 %v96
    %vm103 = vmor %vm101, %vm102
    %v104 = vsel %vm103, %v96, %v100
    %v105 = vand.u32 2147483647, %v95
    %vm106 = vcmp.eq.f32.partialorder %v105, 8.507059e+37
    %v107 = vand.u32 %v95, 2147483648
    %v108 = vor.u32 1.1754944e-38, %v107
    %v109 = vsel %vm106, %v108, %v104
    %v110 = vmul.f32 1.0, %v109
    %v111 = vtanh.pop %v91
    %v112 = vmul.f32 %v110, 0.0
    %114 = vrot.lane.b32.xlu0 %v111, 64
    %v115 = vpop.permute.xlu0 %114
    %v117 = vmul.f32 %v110, %v115
    %119 = vrot.lane.b32.xlu0 %v117, 32
    %v120 = vpop.permute.xlu0 %119
    %v122 = vadd.f32 %v112, %v120
    %v123 = vtanh.pop %v122
    %125 = vrot.lane.b32.xlu0 %v123, 64
    %v126 = vpop.permute.xlu0 %125
    %v128 = vmul.f32 %v110, %v126
    %v129 = vperm.slane %v24, 0
    %131 = vrot.lane.b32.xlu0 %v128, 32
    %v132 = vpop.permute.xlu0 %131
    %v133 = vsel %vm66, %v132, 0
    %135 = vmatpush.msra.mxu0 0.0
    %136 = vmatpush.msra.mxu0 0.0
    %137 = vmatpush.msra.mxu0 0.0
    %138 = vmatpush.msra.mxu0 0.0
    %139 = vmatpush.msra.mxu0 0.0
    %140 = vmatpush.msra.mxu0 0.0
    %141 = vmatpush.msra.mxu0 0.0
    %142 = vmatpush.msra.mxu0 0.0
    %143 = vmatpush.msra.mxu0 0.0
    %144 = vmatpush.msra.mxu0 0.0
    %145 = vmatpush.msra.mxu0 0.0
    %146 = vmatpush.msra.mxu0 0.0
    %147 = vmatpush.msra.mxu0 %v29
    %148 = vmatpush.msra.mxu0 %v28
    %149 = vmatpush.msra.mxu0 %v27
    %150 = vmatpush.msra.mxu0 %v26
    %151 = vmatmul.f32.gmra.mxu0 %v133
    %v152 = vpop.f32.mrf.mxu0
    %v153 = vadd.f32 %v129, %v152
    %154 = vdwg.mxu0
    %vm155 = vcmask 123904
    %v156 = vsel %vm155, %v153, -inf
    %157 = vmax.xlane.f32.xlu0 %v156
    %v158 = vpop.xlane.xlu0 %157
    %vm159 = vcmp.eq.f32.partialorder %v153, %v158
    %v160 = vsel %vm159, %v65, 16
    %v161 = vsel %vm155, %v160, 2147483647
    %v162 = vand.u32 %v161, 65535
    %v163 = vshra.s32 %v161, 16
    %v164 = vcvt.s32.f32 %v162
    %v165 = vcvt.s32.f32 %v163
    %166 = vmin.xlane.f32.xlu0 %v165
    %v167 = vpop.xlane.xlu0 %166
    %vm168 = vcmp.eq.f32.partialorder %v165, %v167
    %v169 = vsel %vm168, %v164, inf
    %170 = vmin.xlane.f32.xlu0 %v169
    %v171 = vpop.xlane.xlu0 %170
    %v172 = vcvt.f32.s32 %v171
    %v173 = vcvt.f32.s32 %v167
    %v174 = vshll.u32 %v173, 16
    %v175 = vadd.s32 %v174, %v172
    %vm176 = vcmp.eq.s32.totalorder %v65, %v175
    %v177 = vsel %vm176, 1, 0
    %v178 = vcvt.s32.f32 %v177
    %179 = vrot.lane.b32.xlu0 %v128, 48
    %v180 = vpop.permute.xlu0 %179
    %vm182 = vcmask 130048
    %v183 = vsel %vm182, %v178, %v180
    %vm184 = vcmask 392192
    %v186 = vsel %vm184, %v183, 0
    %188 = vmatpush.msra.mxu0 0.0
    %189 = vmatpush.msra.mxu0 0.0
    %190 = vmatpush.msra.mxu0 0.0
    %191 = vmatpush.msra.mxu0 0.0
    %192 = vmatpush.msra.mxu0 0.0
    %193 = vmatpush.msra.mxu0 0.0
    %194 = vmatpush.msra.mxu0 0.0
    %195 = vmatpush.msra.mxu0 0.0
    %196 = vmatpush.msra.mxu0 0.0
    %197 = vmatpush.msra.mxu0 0.0
    %198 = vmatpush.msra.mxu0 %v22
    %199 = vmatpush.msra.mxu0 %v21
    %200 = vmatpush.msra.mxu0 %v20
    %201 = vmatpush.msra.mxu0 %v19
    %202 = vmatpush.msra.mxu0 %v18
    %203 = vmatpush.msra.mxu0 %v17
    %204 = vmatmul.f32.gmra.mxu0 %v186
    %v205 = vpop.f32.mrf.mxu0
    %v206 = vadd.f32 0.0, %v205
    %207 = vdwg.mxu0
    %v208 = vxor.u32 %v206, 2147483648
    %v209 = vmul.f32 %v208, 1.442695
    %v210 = vpow.pop %v209
    %v211 = vadd.f32 %v210, 1.0
    %v212 = vrcp.pop %v211
    %v213 = vmul.f32 %v211, %v212
    %v214 = vsub.f32 1.0, %v213
    %v215 = vmul.f32 %v212, %v214
    %v216 = vadd.f32 %v212, %v215
    %vm217 = vweird.f32 %v211
    %vm218 = vweird.f32 %v212
    %vm219 = vmor %vm217, %vm218
    %v220 = vsel %vm219, %v212, %v216
    %v221 = vand.u32 2147483647, %v211
    %vm222 = vcmp.eq.f32.partialorder %v221, 8.507059e+37
    %v223 = vand.u32 %v211, 2147483648
    %v224 = vor.u32 1.1754944e-38, %v223
    %v225 = vsel %vm222, %v224, %v220
    %v226 = vmul.f32 1.0, %v225
    %v227 = vtanh.pop %v206
    %v228 = vmul.f32 %v226, %v122
    %230 = vrot.lane.b32.xlu0 %v227, 64
    %v231 = vpop.permute.xlu0 %230
    %v233 = vmul.f32 %v226, %v231
    %235 = vrot.lane.b32.xlu0 %v233, 32
    %v236 = vpop.permute.xlu0 %235
    %v238 = vadd.f32 %v228, %v236
    %v239 = vtanh.pop %v238
    %241 = vrot.lane.b32.xlu0 %v239, 64
    %v242 = vpop.permute.xlu0 %241
    %v244 = vmul.f32 %v226, %v242
    %246 = vrot.lane.b32.xlu0 %v244, 32
    %v247 = vpop.permute.xlu0 %246
    %v248 = vsel %vm66, %v247, 0
    %250 = vmatpush.msra.mxu0 0.0
    %251 = vmatpush.msra.mxu0 0.0
    %252 = vmatpush.msra.mxu0 0.0
    %253 = vmatpush.msra.mxu0 0.0
    %254 = vmatpush.msra.mxu0 0.0
    %255 = vmatpush.msra.mxu0 0.0
    %256 = vmatpush.msra.mxu0 0.0
    %257 = vmatpush.msra.mxu0 0.0
    %258 = vmatpush.msra.mxu0 0.0
    %259 = vmatpush.msra.mxu0 0.0
    %260 = vmatpush.msra.mxu0 0.0
    %261 = vmatpush.msra.mxu0 0.0
    %262 = vmatpush.msra.mxu0 %v29
    %263 = vmatpush.msra.mxu0 %v28
    %264 = vmatpush.msra.mxu0 %v27
    %265 = vmatpush.msra.mxu0 %v26
    %266 = vmatmul.f32.gmra.mxu0 %v248
    %v267 = vpop.f32.mrf.mxu0
    %v268 = vadd.f32 %v129, %v267
    %269 = vdwg.mxu0
    %v270 = vsel %vm155, %v268, -inf
    %271 = vmax.xlane.f32.xlu0 %v270
    %v272 = vpop.xlane.xlu0 %271
    %vm273 = vcmp.eq.f32.partialorder %v268, %v272
    %v274 = vsel %vm273, %v65, 16
    %v275 = vsel %vm155, %v274, 2147483647
    %v276 = vand.u32 %v275, 65535
    %v277 = vshra.s32 %v275, 16
    %v278 = vcvt.s32.f32 %v276
    %v279 = vcvt.s32.f32 %v277
    %280 = vmin.xlane.f32.xlu0 %v279
    %v281 = vpop.xlane.xlu0 %280
    %vm282 = vcmp.eq.f32.partialorder %v279, %v281
    %v283 = vsel %vm282, %v278, inf
    %284 = vmin.xlane.f32.xlu0 %v283
    %v285 = vpop.xlane.xlu0 %284
    %v286 = vcvt.f32.s32 %v285
    %v287 = vcvt.f32.s32 %v281
    %v288 = vshll.u32 %v287, 16
    %v289 = vadd.s32 %v288, %v286
    %vm290 = vcmp.eq.s32.totalorder %v65, %v289
    %v291 = vsel %vm290, 1, 0
    %v292 = vcvt.s32.f32 %v291
    %293 = vrot.lane.b32.xlu0 %v244, 48
    %v294 = vpop.permute.xlu0 %293
    %v296 = vsel %vm182, %v292, %v294
    %v298 = vsel %vm184, %v296, 0
    %300 = vmatpush.msra.mxu0 0.0
    %301 = vmatpush.msra.mxu0 0.0
    %302 = vmatpush.msra.mxu0 0.0
    %303 = vmatpush.msra.mxu0 0.0
    %304 = vmatpush.msra.mxu0 0.0
    %305 = vmatpush.msra.mxu0 0.0
    %306 = vmatpush.msra.mxu0 0.0
    %307 = vmatpush.msra.mxu0 0.0
    %308 = vmatpush.msra.mxu0 0.0
    %309 = vmatpush.msra.mxu0 0.0
    %310 = vmatpush.msra.mxu0 %v22
    %311 = vmatpush.msra.mxu0 %v21
    %312 = vmatpush.msra.mxu0 %v20
    %313 = vmatpush.msra.mxu0 %v19
    %314 = vmatpush.msra.mxu0 %v18
    %315 = vmatpush.msra.mxu0 %v17
    %316 = vmatmul.f32.gmra.mxu0 %v298
    %v317 = vpop.f32.mrf.mxu0
    %v318 = vadd.f32 0.0, %v317
    %319 = vdwg.mxu0
    %v320 = vxor.u32 %v318, 2147483648
    %v321 = vmul.f32 %v320, 1.442695
    %v322 = vpow.pop %v321
    %v323 = vadd.f32 %v322, 1.0
    %v324 = vrcp.pop %v323
    %v325 = vmul.f32 %v323, %v324
    %v326 = vsub.f32 1.0, %v325
    %v327 = vmul.f32 %v324, %v326
    %v328 = vadd.f32 %v324, %v327
    %vm329 = vweird.f32 %v323
    %vm330 = vweird.f32 %v324
    %vm331 = vmor %vm329, %vm330
    %v332 = vsel %vm331, %v324, %v328
    %v333 = vand.u32 2147483647, %v323
    %vm334 = vcmp.eq.f32.partialorder %v333, 8.507059e+37
    %v335 = vand.u32 %v323, 2147483648
    %v336 = vor.u32 1.1754944e-38, %v335
    %v337 = vsel %vm334, %v336, %v332
    %v338 = vmul.f32 1.0, %v337
    %v339 = vtanh.pop %v318
    %v340 = vmul.f32 %v338, %v238
    %342 = vrot.lane.b32.xlu0 %v339, 64
    %v343 = vpop.permute.xlu0 %342
    %v345 = vmul.f32 %v338, %v343
    %347 = vrot.lane.b32.xlu0 %v345, 32
    %v348 = vpop.permute.xlu0 %347
    %v350 = vadd.f32 %v340, %v348
    %v351 = vtanh.pop %v350
    %353 = vrot.lane.b32.xlu0 %v351, 64
    %v354 = vpop.permute.xlu0 %353
    %v356 = vmul.f32 %v338, %v354
    %358 = vrot.lane.b32.xlu0 %v356, 32
    %v359 = vpop.permute.xlu0 %358
    %v360 = vsel %vm66, %v359, 0
    %362 = vmatpush.msra.mxu0 0.0
    %363 = vmatpush.msra.mxu0 0.0
    %364 = vmatpush.msra.mxu0 0.0
    %365 = vmatpush.msra.mxu0 0.0
    %366 = vmatpush.msra.mxu0 0.0
    %367 = vmatpush.msra.mxu0 0.0
    %368 = vmatpush.msra.mxu0 0.0
    %369 = vmatpush.msra.mxu0 0.0
    %370 = vmatpush.msra.mxu0 0.0
    %371 = vmatpush.msra.mxu0 0.0
    %372 = vmatpush.msra.mxu0 0.0
    %373 = vmatpush.msra.mxu0 0.0
    %374 = vmatpush.msra.mxu0 %v29
    %375 = vmatpush.msra.mxu0 %v28
    %376 = vmatpush.msra.mxu0 %v27
    %377 = vmatpush.msra.mxu0 %v26
    %378 = vmatmul.f32.gmra.mxu0 %v360
    %v379 = vpop.f32.mrf.mxu0
    %v380 = vadd.f32 %v129, %v379
    %381 = vdwg.mxu0
    %v382 = vsel %vm155, %v380, -inf
    %383 = vmax.xlane.f32.xlu0 %v382
    %v384 = vpop.xlane.xlu0 %383
    %vm385 = vcmp.eq.f32.partialorder %v380, %v384
    %v386 = vsel %vm385, %v65, 16
    %v387 = vsel %vm155, %v386, 2147483647
    %v388 = vand.u32 %v387, 65535
    %v389 = vshra.s32 %v387, 16
    %v390 = vcvt.s32.f32 %v388
    %v391 = vcvt.s32.f32 %v389
    %392 = vmin.xlane.f32.xlu0 %v391
    %v393 = vpop.xlane.xlu0 %392
    %vm394 = vcmp.eq.f32.partialorder %v391, %v393
    %v395 = vsel %vm394, %v390, inf
    %396 = vmin.xlane.f32.xlu0 %v395
    %v397 = vpop.xlane.xlu0 %396
    %v398 = vcvt.f32.s32 %v397
    %v399 = vcvt.f32.s32 %v393
    %v400 = vshll.u32 %v399, 16
    %v401 = vadd.s32 %v400, %v398
    %vm402 = vcmp.eq.s32.totalorder %v65, %v401
    %v403 = vsel %vm402, 1, 0
    %v404 = vcvt.s32.f32 %v403
    %405 = vrot.lane.b32.xlu0 %v356, 48
    %v406 = vpop.permute.xlu0 %405
    %v408 = vsel %vm182, %v404, %v406
    %v410 = vsel %vm184, %v408, 0
    %412 = vmatpush.msra.mxu0 0.0
    %413 = vmatpush.msra.mxu0 0.0
    %414 = vmatpush.msra.mxu0 0.0
    %415 = vmatpush.msra.mxu0 0.0
    %416 = vmatpush.msra.mxu0 0.0
    %417 = vmatpush.msra.mxu0 0.0
    %418 = vmatpush.msra.mxu0 0.0
    %419 = vmatpush.msra.mxu0 0.0
    %420 = vmatpush.msra.mxu0 0.0
    %421 = vmatpush.msra.mxu0 0.0
    %422 = vmatpush.msra.mxu0 %v22
    %423 = vmatpush.msra.mxu0 %v21
    %424 = vmatpush.msra.mxu0 %v20
    %425 = vmatpush.msra.mxu0 %v19
    %426 = vmatpush.msra.mxu0 %v18
    %427 = vmatpush.msra.mxu0 %v17
    %428 = vmatmul.f32.gmra.mxu0 %v410
    %v429 = vpop.f32.mrf.mxu0
    %v430 = vadd.f32 0.0, %v429
    %431 = vdwg.mxu0
    %v432 = vxor.u32 %v430, 2147483648
    %v433 = vmul.f32 %v432, 1.442695
    %v434 = vpow.pop %v433
    %v435 = vadd.f32 %v434, 1.0
    %v436 = vrcp.pop %v435
    %v437 = vmul.f32 %v435, %v436
    %v438 = vsub.f32 1.0, %v437
    %v439 = vmul.f32 %v436, %v438
    %v440 = vadd.f32 %v436, %v439
    %vm441 = vweird.f32 %v435
    %vm442 = vweird.f32 %v436
    %vm443 = vmor %vm441, %vm442
    %v444 = vsel %vm443, %v436, %v440
    %v445 = vand.u32 2147483647, %v435
    %vm446 = vcmp.eq.f32.partialorder %v445, 8.507059e+37
    %v447 = vand.u32 %v435, 2147483648
    %v448 = vor.u32 1.1754944e-38, %v447
    %v449 = vsel %vm446, %v448, %v444
    %v450 = vmul.f32 1.0, %v449
    %v451 = vtanh.pop %v430
    %v452 = vmul.f32 %v450, %v350
    %454 = vrot.lane.b32.xlu0 %v451, 64
    %v455 = vpop.permute.xlu0 %454
    %v457 = vmul.f32 %v450, %v455
    %459 = vrot.lane.b32.xlu0 %v457, 32
    %v460 = vpop.permute.xlu0 %459
    %v462 = vadd.f32 %v452, %v460
    %v463 = vtanh.pop %v462
    %465 = vrot.lane.b32.xlu0 %v463, 64
    %v466 = vpop.permute.xlu0 %465
    %v468 = vmul.f32 %v450, %v466
    %470 = vrot.lane.b32.xlu0 %v468, 32
    %v471 = vpop.permute.xlu0 %470
    %v472 = vsel %vm66, %v471, 0
    %474 = vmatpush.msra.mxu0 0.0
    %475 = vmatpush.msra.mxu0 0.0
    %476 = vmatpush.msra.mxu0 0.0
    %477 = vmatpush.msra.mxu0 0.0
    %478 = vmatpush.msra.mxu0 0.0
    %479 = vmatpush.msra.mxu0 0.0
    %480 = vmatpush.msra.mxu0 0.0
    %481 = vmatpush.msra.mxu0 0.0
    %482 = vmatpush.msra.mxu0 0.0
    %483 = vmatpush.msra.mxu0 0.0
    %484 = vmatpush.msra.mxu0 0.0
    %485 = vmatpush.msra.mxu0 0.0
    %486 = vmatpush.msra.mxu0 %v29
    %487 = vmatpush.msra.mxu0 %v28
    %488 = vmatpush.msra.mxu0 %v27
    %489 = vmatpush.msra.mxu0 %v26
    %490 = vmatmul.f32.gmra.mxu0 %v472
    %v491 = vpop.f32.mrf.mxu0
    %v492 = vadd.f32 %v129, %v491
    %493 = vdwg.mxu0
    %v494 = vsel %vm155, %v492, -inf
    %495 = vmax.xlane.f32.xlu0 %v494
    %v496 = vpop.xlane.xlu0 %495
    %vm497 = vcmp.eq.f32.partialorder %v492, %v496
    %v498 = vsel %vm497, %v65, 16
    %v499 = vsel %vm155, %v498, 2147483647
    %v500 = vand.u32 %v499, 65535
    %v501 = vshra.s32 %v499, 16
    %v502 = vcvt.s32.f32 %v500
    %v503 = vcvt.s32.f32 %v501
    %504 = vmin.xlane.f32.xlu0 %v503
    %v505 = vpop.xlane.xlu0 %504
    %vm506 = vcmp.eq.f32.partialorder %v503, %v505
    %v507 = vsel %vm506, %v502, inf
    %508 = vmin.xlane.f32.xlu0 %v507
    %v509 = vpop.xlane.xlu0 %508
    %v510 = vcvt.f32.s32 %v509
    %v511 = vcvt.f32.s32 %v505
    %v512 = vshll.u32 %v511, 16
    %v513 = vadd.s32 %v512, %v510
    %vm514 = vcmp.eq.s32.totalorder %v65, %v513
    %v515 = vsel %vm514, 1, 0
    %v516 = vcvt.s32.f32 %v515
    %517 = vrot.lane.b32.xlu0 %v468, 48
    %v518 = vpop.permute.xlu0 %517
    %v520 = vsel %vm182, %v516, %v518
    %v522 = vsel %vm184, %v520, 0
    %524 = vmatpush.msra.mxu0 0.0
    %525 = vmatpush.msra.mxu0 0.0
    %526 = vmatpush.msra.mxu0 0.0
    %527 = vmatpush.msra.mxu0 0.0
    %528 = vmatpush.msra.mxu0 0.0
    %529 = vmatpush.msra.mxu0 0.0
    %530 = vmatpush.msra.mxu0 0.0
    %531 = vmatpush.msra.mxu0 0.0
    %532 = vmatpush.msra.mxu0 0.0
    %533 = vmatpush.msra.mxu0 0.0
    %534 = vmatpush.msra.mxu0 %v22
    %535 = vmatpush.msra.mxu0 %v21
    %536 = vmatpush.msra.mxu0 %v20
    %537 = vmatpush.msra.mxu0 %v19
    %538 = vmatpush.msra.mxu0 %v18
    %539 = vmatpush.msra.mxu0 %v17
    %540 = vmatmul.f32.gmra.mxu0 %v522
    %v541 = vpop.f32.mrf.mxu0
    %v542 = vadd.f32 0.0, %v541
    %543 = vdwg.mxu0
    %v544 = vxor.u32 %v542, 2147483648
    %v545 = vmul.f32 %v544, 1.442695
    %v546 = vpow.pop %v545
    %v547 = vadd.f32 %v546, 1.0
    %v548 = vrcp.pop %v547
    %v549 = vmul.f32 %v547, %v548
    %v550 = vsub.f32 1.0, %v549
    %v551 = vmul.f32 %v548, %v550
    %v552 = vadd.f32 %v548, %v551
    %vm553 = vweird.f32 %v547
    %vm554 = vweird.f32 %v548
    %vm555 = vmor %vm553, %vm554
    %v556 = vsel %vm555, %v548, %v552
    %v557 = vand.u32 2147483647, %v547
    %vm558 = vcmp.eq.f32.partialorder %v557, 8.507059e+37
    %v559 = vand.u32 %v547, 2147483648
    %v560 = vor.u32 1.1754944e-38, %v559
    %v561 = vsel %vm558, %v560, %v556
    %v562 = vmul.f32 1.0, %v561
    %v563 = vtanh.pop %v542
    %v564 = vmul.f32 %v562, %v462
    %566 = vrot.lane.b32.xlu0 %v563, 64
    %v567 = vpop.permute.xlu0 %566
    %v569 = vmul.f32 %v562, %v567
    %571 = vrot.lane.b32.xlu0 %v569, 32
    %v572 = vpop.permute.xlu0 %571
    %v574 = vadd.f32 %v564, %v572
    %v575 = vtanh.pop %v574
    %577 = vrot.lane.b32.xlu0 %v575, 64
    %v578 = vpop.permute.xlu0 %577
    %v580 = vmul.f32 %v562, %v578
    %582 = vrot.lane.b32.xlu0 %v580, 32
    %v583 = vpop.permute.xlu0 %582
    %v584 = vsel %vm66, %v583, 0
    %586 = vmatpush.msra.mxu0 0.0
    %587 = vmatpush.msra.mxu0 0.0
    %588 = vmatpush.msra.mxu0 0.0
    %589 = vmatpush.msra.mxu0 0.0
    %590 = vmatpush.msra.mxu0 0.0
    %591 = vmatpush.msra.mxu0 0.0
    %592 = vmatpush.msra.mxu0 0.0
    %593 = vmatpush.msra.mxu0 0.0
    %594 = vmatpush.msra.mxu0 0.0
    %595 = vmatpush.msra.mxu0 0.0
    %596 = vmatpush.msra.mxu0 0.0
    %597 = vmatpush.msra.mxu0 0.0
    %598 = vmatpush.msra.mxu0 %v29
    %599 = vmatpush.msra.mxu0 %v28
    %600 = vmatpush.msra.mxu0 %v27
    %601 = vmatpush.msra.mxu0 %v26
    %602 = vmatmul.f32.gmra.mxu0 %v584
    %v603 = vpop.f32.mrf.mxu0
    %v604 = vadd.f32 %v129, %v603
    %605 = vdwg.mxu0
    %v606 = vsel %vm155, %v604, -inf
    %607 = vmax.xlane.f32.xlu0 %v606
    %v608 = vpop.xlane.xlu0 %607
    %vm609 = vcmp.eq.f32.partialorder %v604, %v608
    %v610 = vsel %vm609, %v65, 16
    %v611 = vsel %vm155, %v610, 2147483647
    %v612 = vand.u32 %v611, 65535
    %v613 = vshra.s32 %v611, 16
    %v614 = vcvt.s32.f32 %v612
    %v615 = vcvt.s32.f32 %v613
    %616 = vmin.xlane.f32.xlu0 %v615
    %v617 = vpop.xlane.xlu0 %616
    %vm618 = vcmp.eq.f32.partialorder %v615, %v617
    %v619 = vsel %vm618, %v614, inf
    %620 = vmin.xlane.f32.xlu0 %v619
    %v621 = vpop.xlane.xlu0 %620
    %v622 = vcvt.f32.s32 %v621
    %v623 = vcvt.f32.s32 %v617
    %v624 = vshll.u32 %v623, 16
    %v625 = vadd.s32 %v624, %v622
    %vm626 = vcmp.eq.s32.totalorder %v65, %v625
    %v627 = vsel %vm626, 1, 0
    %v628 = vcvt.s32.f32 %v627
    %629 = vrot.lane.b32.xlu0 %v580, 48
    %v630 = vpop.permute.xlu0 %629
    %v632 = vsel %vm182, %v628, %v630
    %v634 = vsel %vm184, %v632, 0
    %636 = vmatpush.msra.mxu0 0.0
    %637 = vmatpush.msra.mxu0 0.0
    %638 = vmatpush.msra.mxu0 0.0
    %639 = vmatpush.msra.mxu0 0.0
    %640 = vmatpush.msra.mxu0 0.0
    %641 = vmatpush.msra.mxu0 0.0
    %642 = vmatpush.msra.mxu0 0.0
    %643 = vmatpush.msra.mxu0 0.0
    %644 = vmatpush.msra.mxu0 0.0
    %645 = vmatpush.msra.mxu0 0.0
    %646 = vmatpush.msra.mxu0 %v22
    %647 = vmatpush.msra.mxu0 %v21
    %648 = vmatpush.msra.mxu0 %v20
    %649 = vmatpush.msra.mxu0 %v19
    %650 = vmatpush.msra.mxu0 %v18
    %651 = vmatpush.msra.mxu0 %v17
    %652 = vmatmul.f32.gmra.mxu0 %v634
    %v653 = vpop.f32.mrf.mxu0
    %v654 = vadd.f32 0.0, %v653
    %655 = vdwg.mxu0
    %v656 = vxor.u32 %v654, 2147483648
    %v657 = vmul.f32 %v656, 1.442695
    %v658 = vpow.pop %v657
    %v659 = vadd.f32 %v658, 1.0
    %v660 = vrcp.pop %v659
    %v661 = vmul.f32 %v659, %v660
    %v662 = vsub.f32 1.0, %v661
    %v663 = vmul.f32 %v660, %v662
    %v664 = vadd.f32 %v660, %v663
    %vm665 = vweird.f32 %v659
    %vm666 = vweird.f32 %v660
    %vm667 = vmor %vm665, %vm666
    %v668 = vsel %vm667, %v660, %v664
    %v669 = vand.u32 2147483647, %v659
    %vm670 = vcmp.eq.f32.partialorder %v669, 8.507059e+37
    %v671 = vand.u32 %v659, 2147483648
    %v672 = vor.u32 1.1754944e-38, %v671
    %v673 = vsel %vm670, %v672, %v668
    %v674 = vmul.f32 1.0, %v673
    %v675 = vtanh.pop %v654
    %v676 = vmul.f32 %v674, %v574
    %678 = vrot.lane.b32.xlu0 %v675, 64
    %v679 = vpop.permute.xlu0 %678
    %v681 = vmul.f32 %v674, %v679
    %683 = vrot.lane.b32.xlu0 %v681, 32
    %v684 = vpop.permute.xlu0 %683
    %v686 = vadd.f32 %v676, %v684
    %v687 = vtanh.pop %v686
    %689 = vrot.lane.b32.xlu0 %v687, 64
    %v690 = vpop.permute.xlu0 %689
    %v692 = vmul.f32 %v674, %v690
    %694 = vrot.lane.b32.xlu0 %v692, 32
    %v695 = vpop.permute.xlu0 %694
    %v696 = vsel %vm66, %v695, 0
    %698 = vmatpush.msra.mxu0 0.0
    %699 = vmatpush.msra.mxu0 0.0
    %700 = vmatpush.msra.mxu0 0.0
    %701 = vmatpush.msra.mxu0 0.0
    %702 = vmatpush.msra.mxu0 0.0
    %703 = vmatpush.msra.mxu0 0.0
    %704 = vmatpush.msra.mxu0 0.0
    %705 = vmatpush.msra.mxu0 0.0
    %706 = vmatpush.msra.mxu0 0.0
    %707 = vmatpush.msra.mxu0 0.0
    %708 = vmatpush.msra.mxu0 0.0
    %709 = vmatpush.msra.mxu0 0.0
    %710 = vmatpush.msra.mxu0 %v29
    %711 = vmatpush.msra.mxu0 %v28
    %712 = vmatpush.msra.mxu0 %v27
    %713 = vmatpush.msra.mxu0 %v26
    %714 = vmatmul.f32.gmra.mxu0 %v696
    %v715 = vpop.f32.mrf.mxu0
    %v716 = vadd.f32 %v129, %v715
    %717 = vdwg.mxu0
    %v718 = vsel %vm155, %v716, -inf
    %719 = vmax.xlane.f32.xlu0 %v718
    %v720 = vpop.xlane.xlu0 %719
    %vm721 = vcmp.eq.f32.partialorder %v716, %v720
    %v722 = vsel %vm721, %v65, 16
    %v723 = vsel %vm155, %v722, 2147483647
    %v724 = vand.u32 %v723, 65535
    %v725 = vshra.s32 %v723, 16
    %v726 = vcvt.s32.f32 %v724
    %v727 = vcvt.s32.f32 %v725
    %728 = vmin.xlane.f32.xlu0 %v727
    %v729 = vpop.xlane.xlu0 %728
    %vm730 = vcmp.eq.f32.partialorder %v727, %v729
    %v731 = vsel %vm730, %v726, inf
    %732 = vmin.xlane.f32.xlu0 %v731
    %v733 = vpop.xlane.xlu0 %732
    %v734 = vcvt.f32.s32 %v733
    %v735 = vcvt.f32.s32 %v729
    %v736 = vshll.u32 %v735, 16
    %v737 = vadd.s32 %v736, %v734
    %vm738 = vcmp.eq.s32.totalorder %v65, %v737
    %v739 = vsel %vm738, 1, 0
    %v740 = vcvt.s32.f32 %v739
    %741 = vrot.lane.b32.xlu0 %v692, 48
    %v742 = vpop.permute.xlu0 %741
    %v744 = vsel %vm182, %v740, %v742
    %v746 = vsel %vm184, %v744, 0
    %748 = vmatpush.msra.mxu0 0.0
    %749 = vmatpush.msra.mxu0 0.0
    %750 = vmatpush.msra.mxu0 0.0
    %751 = vmatpush.msra.mxu0 0.0
    %752 = vmatpush.msra.mxu0 0.0
    %753 = vmatpush.msra.mxu0 0.0
    %754 = vmatpush.msra.mxu0 0.0
    %755 = vmatpush.msra.mxu0 0.0
    %756 = vmatpush.msra.mxu0 0.0
    %757 = vmatpush.msra.mxu0 0.0
    %758 = vmatpush.msra.mxu0 %v22
    %759 = vmatpush.msra.mxu0 %v21
    %760 = vmatpush.msra.mxu0 %v20
    %761 = vmatpush.msra.mxu0 %v19
    %762 = vmatpush.msra.mxu0 %v18
    %763 = vmatpush.msra.mxu0 %v17
    %764 = vmatmul.f32.gmra.mxu0 %v746
    %v765 = vpop.f32.mrf.mxu0
    %v766 = vadd.f32 0.0, %v765
    %767 = vdwg.mxu0
    %v768 = vxor.u32 %v766, 2147483648
    %v769 = vmul.f32 %v768, 1.442695
    %v770 = vpow.pop %v769
    %v771 = vadd.f32 %v770, 1.0
    %v772 = vrcp.pop %v771
    %v773 = vmul.f32 %v771, %v772
    %v774 = vsub.f32 1.0, %v773
    %v775 = vmul.f32 %v772, %v774
    %v776 = vadd.f32 %v772, %v775
    %vm777 = vweird.f32 %v771
    %vm778 = vweird.f32 %v772
    %vm779 = vmor %vm777, %vm778
    %v780 = vsel %vm779, %v772, %v776
    %v781 = vand.u32 2147483647, %v771
    %vm782 = vcmp.eq.f32.partialorder %v781, 8.507059e+37
    %v783 = vand.u32 %v771, 2147483648
    %v784 = vor.u32 1.1754944e-38, %v783
    %v785 = vsel %vm782, %v784, %v780
    %v786 = vmul.f32 1.0, %v785
    %v787 = vtanh.pop %v766
    %v788 = vmul.f32 %v786, %v686
    %790 = vrot.lane.b32.xlu0 %v787, 64
    %v791 = vpop.permute.xlu0 %790
    %v793 = vmul.f32 %v786, %v791
    %795 = vrot.lane.b32.xlu0 %v793, 32
    %v796 = vpop.permute.xlu0 %795
    %v798 = vadd.f32 %v788, %v796
    %v799 = vtanh.pop %v798
    %801 = vrot.lane.b32.xlu0 %v799, 64
    %v802 = vpop.permute.xlu0 %801
    %v804 = vmul.f32 %v786, %v802
    %806 = vrot.lane.b32.xlu0 %v804, 32
    %v807 = vpop.permute.xlu0 %806
    %v808 = vsel %vm66, %v807, 0
    %810 = vmatpush.msra.mxu0 0.0
    %811 = vmatpush.msra.mxu0 0.0
    %812 = vmatpush.msra.mxu0 0.0
    %813 = vmatpush.msra.mxu0 0.0
    %814 = vmatpush.msra.mxu0 0.0
    %815 = vmatpush.msra.mxu0 0.0
    %816 = vmatpush.msra.mxu0 0.0
    %817 = vmatpush.msra.mxu0 0.0
    %818 = vmatpush.msra.mxu0 0.0
    %819 = vmatpush.msra.mxu0 0.0
    %820 = vmatpush.msra.mxu0 0.0
    %821 = vmatpush.msra.mxu0 0.0
    %822 = vmatpush.msra.mxu0 %v29
    %823 = vmatpush.msra.mxu0 %v28
    %824 = vmatpush.msra.mxu0 %v27
    %825 = vmatpush.msra.mxu0 %v26
    %826 = vmatmul.f32.gmra.mxu0 %v808
    %v827 = vpop.f32.mrf.mxu0
    %v828 = vadd.f32 %v129, %v827
    %829 = vdwg.mxu0
    %v830 = vsel %vm155, %v828, -inf
    %831 = vmax.xlane.f32.xlu0 %v830
    %v832 = vpop.xlane.xlu0 %831
    %vm833 = vcmp.eq.f32.partialorder %v828, %v832
    %v834 = vsel %vm833, %v65, 16
    %v835 = vsel %vm155, %v834, 2147483647
    %v836 = vand.u32 %v835, 65535
    %v837 = vshra.s32 %v835, 16
    %v838 = vcvt.s32.f32 %v836
    %v839 = vcvt.s32.f32 %v837
    %840 = vmin.xlane.f32.xlu0 %v839
    %v841 = vpop.xlane.xlu0 %840
    %vm842 = vcmp.eq.f32.partialorder %v839, %v841
    %v843 = vsel %vm842, %v838, inf
    %844 = vmin.xlane.f32.xlu0 %v843
    %v845 = vpop.xlane.xlu0 %844
    %v846 = vcvt.f32.s32 %v845
    %v847 = vcvt.f32.s32 %v841
    %v848 = vshll.u32 %v847, 16
    %v849 = vadd.s32 %v848, %v846
    %vm850 = vcmp.eq.s32.totalorder %v65, %v849
    %v851 = vsel %vm850, 1, 0
    %v852 = vcvt.s32.f32 %v851
    %853 = vrot.lane.b32.xlu0 %v804, 48
    %v854 = vpop.permute.xlu0 %853
    %v856 = vsel %vm182, %v852, %v854
    %v858 = vsel %vm184, %v856, 0
    %860 = vmatpush.msra.mxu0 0.0
    %861 = vmatpush.msra.mxu0 0.0
    %862 = vmatpush.msra.mxu0 0.0
    %863 = vmatpush.msra.mxu0 0.0
    %864 = vmatpush.msra.mxu0 0.0
    %865 = vmatpush.msra.mxu0 0.0
    %866 = vmatpush.msra.mxu0 0.0
    %867 = vmatpush.msra.mxu0 0.0
    %868 = vmatpush.msra.mxu0 0.0
    %869 = vmatpush.msra.mxu0 0.0
    %870 = vmatpush.msra.mxu0 %v22
    %871 = vmatpush.msra.mxu0 %v21
    %872 = vmatpush.msra.mxu0 %v20
    %873 = vmatpush.msra.mxu0 %v19
    %874 = vmatpush.msra.mxu0 %v18
    %875 = vmatpush.msra.mxu0 %v17
    %876 = vmatmul.f32.gmra.mxu0 %v858
    %v877 = vpop.f32.mrf.mxu0
    %v878 = vadd.f32 0.0, %v877
    %879 = vdwg.mxu0
    %v880 = vxor.u32 %v878, 2147483648
    %v881 = vmul.f32 %v880, 1.442695
    %v882 = vpow.pop %v881
    %v883 = vadd.f32 %v882, 1.0
    %v884 = vrcp.pop %v883
    %v885 = vmul.f32 %v883, %v884
    %v886 = vsub.f32 1.0, %v885
    %v887 = vmul.f32 %v884, %v886
    %v888 = vadd.f32 %v884, %v887
    %vm889 = vweird.f32 %v883
    %vm890 = vweird.f32 %v884
    %vm891 = vmor %vm889, %vm890
    %v892 = vsel %vm891, %v884, %v888
    %v893 = vand.u32 2147483647, %v883
    %vm894 = vcmp.eq.f32.partialorder %v893, 8.507059e+37
    %v895 = vand.u32 %v883, 2147483648
    %v896 = vor.u32 1.1754944e-38, %v895
    %v897 = vsel %vm894, %v896, %v892
    %v898 = vmul.f32 1.0, %v897
    %v899 = vtanh.pop %v878
    %v900 = vmul.f32 %v898, %v798
    %902 = vrot.lane.b32.xlu0 %v899, 64
    %v903 = vpop.permute.xlu0 %902
    %v905 = vmul.f32 %v898, %v903
    %907 = vrot.lane.b32.xlu0 %v905, 32
    %v908 = vpop.permute.xlu0 %907
    %v910 = vadd.f32 %v900, %v908
    %v911 = vtanh.pop %v910
    %913 = vrot.lane.b32.xlu0 %v911, 64
    %v914 = vpop.permute.xlu0 %913
    %v916 = vmul.f32 %v898, %v914
    %918 = vrot.lane.b32.xlu0 %v916, 32
    %v919 = vpop.permute.xlu0 %918
    %v920 = vsel %vm66, %v919, 0
    %922 = vmatpush.msra.mxu0 0.0
    %923 = vmatpush.msra.mxu0 0.0
    %924 = vmatpush.msra.mxu0 0.0
    %925 = vmatpush.msra.mxu0 0.0
    %926 = vmatpush.msra.mxu0 0.0
    %927 = vmatpush.msra.mxu0 0.0
    %928 = vmatpush.msra.mxu0 0.0
    %929 = vmatpush.msra.mxu0 0.0
    %930 = vmatpush.msra.mxu0 0.0
    %931 = vmatpush.msra.mxu0 0.0
    %932 = vmatpush.msra.mxu0 0.0
    %933 = vmatpush.msra.mxu0 0.0
    %934 = vmatpush.msra.mxu0 %v29
    %935 = vmatpush.msra.mxu0 %v28
    %936 = vmatpush.msra.mxu0 %v27
    %937 = vmatpush.msra.mxu0 %v26
    %938 = vmatmul.f32.gmra.mxu0 %v920
    %v939 = vpop.f32.mrf.mxu0
    %v940 = vadd.f32 %v129, %v939
    %941 = vdwg.mxu0
    %v942 = vsel %vm155, %v940, -inf
    %943 = vmax.xlane.f32.xlu0 %v942
    %v944 = vpop.xlane.xlu0 %943
    %vm945 = vcmp.eq.f32.partialorder %v940, %v944
    %v946 = vsel %vm945, %v65, 16
    %v947 = vsel %vm155, %v946, 2147483647
    %v948 = vand.u32 %v947, 65535
    %v949 = vshra.s32 %v947, 16
    %v950 = vcvt.s32.f32 %v948
    %v951 = vcvt.s32.f32 %v949
    %952 = vmin.xlane.f32.xlu0 %v951
    %v953 = vpop.xlane.xlu0 %952
    %vm954 = vcmp.eq.f32.partialorder %v951, %v953
    %v955 = vsel %vm954, %v950, inf
    %956 = vmin.xlane.f32.xlu0 %v955
    %v957 = vpop.xlane.xlu0 %956
    %v958 = vcvt.f32.s32 %v957
    %v959 = vcvt.f32.s32 %v953
    %v960 = vshll.u32 %v959, 16
    %v961 = vadd.s32 %v960, %v958
    %963 = vrot.lane.b32.xlu0 %v268, 16
    %v964 = vpop.permute.xlu0 %963
    %967 = vrot.lane.b32.xlu0 %v380, 32
    %v968 = vpop.permute.xlu0 %967
    %971 = vrot.lane.b32.xlu0 %v492, 48
    %v972 = vpop.permute.xlu0 %971
    %975 = vrot.lane.b32.xlu0 %v604, 64
    %v976 = vpop.permute.xlu0 %975
    %979 = vrot.lane.b32.xlu0 %v716, 80
    %v980 = vpop.permute.xlu0 %979
    %983 = vrot.lane.b32.xlu0 %v828, 96
    %v984 = vpop.permute.xlu0 %983
    %987 = vrot.lane.b32.xlu0 %v940, 112
    %v988 = vpop.permute.xlu0 %987
    %v990 = vsel %vm182, %v153, %v964
    %v991 = vsel %vm66, %v990, %v968
    %v992 = vsel %vm184, %v991, %v972
    %v993 = vsel %vm40, %v992, %v976
    %vm994 = vcmask 654336
    %v995 = vsel %vm994, %v993, %v980
    %vm996 = vcmask 785408
    %v997 = vsel %vm996, %v995, %v984
    %vm998 = vcmask 916480
    %v999 = vsel %vm998, %v997, %v988
    %1000 = vst [vmem:[%s4] sm:$0x3] %v999
    %vm1001 = vcmask 7168
    %v1002 = vsel %vm1001, %v175, %v289
    %vm1003 = vcmask 15360
    %v1004 = vsel %vm1003, %v1002, %v401
    %vm1005 = vcmask 23552
    %v1006 = vsel %vm1005, %v1004, %v513
    %vm1007 = vcmask 31744
    %v1008 = vsel %vm1007, %v1006, %v625
    %vm1009 = vcmask 39936
    %v1010 = vsel %vm1009, %v1008, %v737
    %vm1011 = vcmask 48128
    %v1012 = vsel %vm1011, %v1010, %v849
    %vm1013 = vcmask 56320
    %v1014 = vsel %vm1013, %v1012, %v961
    %vm1015 = vcmask 58368
    %1016 = vst.msk [vmem:[#allocation2] sm:$0x3] %vm1015, %v1014
    // Predicated region
    $region14: #{discrete_non_rep_sender_forward.1} parent=1 // pred_check
      _
    $region15: #{discrete_non_rep_sender_forward.1} parent=1 // pred_check_branch
      %1018 = sbr.rel (0) target = $region17
    $region16: #{discrete_non_rep_sender_forward.1} parent=1 // pred_region
      %1020 = vsyncadd [#allocation3], 0
      %s1022 = sshll.u32 [#allocation2], 4
      %s1023 = int_to_ptr.vmem [resolvable:$true] %s1022
      %s1024 = sshll.u32 %s3, 4
      %s1025 = int_to_ptr.hbm [resolvable:$true] %s1024
      %1027 = dma.vmem_to_hbm [thread:$0]  %s1023, 32, %s1025, [#allocation3]
    $region17: #{discrete_non_rep_sender_forward.1} parent=1 // pred_fallthru
      _
    // Predicated region
    $region18: #{discrete_non_rep_sender_forward.1} parent=1 // pred_check
      _
    $region19: #{discrete_non_rep_sender_forward.1} parent=1 // pred_check_branch
      %1029 = sbr.rel (0) target = $region21
    $region20: #{discrete_non_rep_sender_forward.1} parent=1 // pred_region
      _
    $region21: #{discrete_non_rep_sender_forward.1} parent=1 // pred_fallthru
      _
    // Predicated region
    $region22: #{discrete_non_rep_sender_forward.1} parent=1 // pred_check
      _
    $region23: #{discrete_non_rep_sender_forward.1} parent=1 // pred_check_branch
      %1031 = sbr.rel (0) target = $region25
    $region24: #{discrete_non_rep_sender_forward.1} parent=1 // pred_region
      %1033 = dma.done [#allocation3], 32
    $region25: #{discrete_non_rep_sender_forward.1} parent=1 // pred_fallthru
      _
    // Predicated region
    $region26: #{discrete_non_rep_sender_forward.1} parent=1 // pred_check
      _
    $region27: #{discrete_non_rep_sender_forward.1} parent=1 // pred_check_branch
      %1035 = sbr.rel (0) target = $region29
    $region28: #{discrete_non_rep_sender_forward.1} parent=1 // pred_region
      _
    $region29: #{discrete_non_rep_sender_forward.1} parent=1 // pred_fallthru
      _
    %1036 = vsyncpa [#allocation3], 1

</llo_original>
